<compile_context>
chip_gen: v5e
topology: v5e:2x2
jax: 0.10.0
libtpu: 0.0.40
codegen_flags: <defaults>
</compile_context>

<pallas_src>
import functools

import jax
import jax.numpy as jnp
from jax.experimental import pallas as pl
from jax.experimental.pallas import tpu as pltpu


# ---------------------------------------------------------------------------
# Kernel: one (image, row-tile) per grid step.
# ---------------------------------------------------------------------------
def _darknet_block_kernel(x_ref, halo_ref, w1_ref, w2_ref, b1_ref, b2_ref, rc_ref,
                          out_ref, *, H, W, TH):
    THW = TH * W
    x_t = x_ref[0]                                  # (C_in, THW)      bf16
    halo_t = halo_ref[0, 0]                         # (C_in, 2W+2)     bf16

    # ---- conv1 (1x1, BN1 scale folded into w1) over the row-extended slab ----
    # ext layout: [0-pad lane | row above (W) | TH tile rows | row below (W) | 0-pad lane]
    x_ext = jnp.concatenate([halo_t[:, : W + 1], x_t, halo_t[:, W + 1:]], axis=1)
    z1 = jnp.dot(w1_ref[...], x_ext, preferred_element_type=jnp.float32)
    z1 = z1 + b1_ref[...]
    y1_ext = jnp.maximum(z1, 0.1 * z1).astype(jnp.bfloat16)     # (C_out, THW+2W+2)

    # ---- tap validity masks in global image coordinates (no div/mod in-kernel) ----
    rc = rc_ref[...]                                # (2, THW) int32: local row / col
    g = rc[0:1, :] + pl.program_id(1) * TH          # global image row of each lane
    c = rc[1:2, :]                                  # image column of each lane
    up_ok, dn_ok = g >= 1, g <= H - 2
    lf_ok, rt_ok = c >= 1, c <= W - 2

    # ---- conv2 (3x3, pad=1) as 9 per-tap accumulating matmuls (K = C_out) ----
    z2 = None
    k = 0
    for dy in (-1, 0, 1):
        for dx in (-1, 0, 1):
            s = (1 + dy) * W + dx + 1               # static lane offset into the ext slab
            tap = y1_ext[:, s:s + THW]              # (C_out, THW) bf16
            if dy != 0 or dx != 0:                  # center tap needs no mask
                m = None
                if dy == -1:
                    m = up_ok
                elif dy == 1:
                    m = dn_ok
                if dx == -1:
                    m = lf_ok if m is None else (m & lf_ok)
                elif dx == 1:
                    m = rt_ok if m is None else (m & rt_ok)
                tap = jnp.where(m, tap, 0)
            contrib = jnp.dot(w2_ref[k], tap, preferred_element_type=jnp.float32)
            z2 = contrib if z2 is None else z2 + contrib
            k += 1

    # ---- BN2 bias + LeakyReLU + residual (all f32 epilogue) ----
    z2 = z2 + b2_ref[...]
    y2 = jnp.maximum(z2, 0.1 * z2)
    out_ref[0] = (y2 + x_t.astype(jnp.float32)).astype(out_ref.dtype)


# ---------------------------------------------------------------------------
# Wrapper
# ---------------------------------------------------------------------------
def _fold_bn(gamma, beta, mean, var, eps=1e-5):
    scale = gamma / jnp.sqrt(var + eps)
    bias = beta - mean * scale
    return scale, bias


def _pick_tile_rows(H, W, target_lanes=1024):
    """Largest-value row tiling: T>=2 tiles, tile lane count a multiple of 128."""
    best = None
    for th in range(1, H):          # exclude th == H so we tile when possible
        if H % th or (th * W) % 128:
            continue
        score = abs(th * W - target_lanes)
        if best is None or score < best[1]:
            best = (th, score)
    return best[0] if best is not None else H


@jax.jit
def darknet_block(x, w1, w2, g1, beta1, m1, v1, g2, beta2, m2, v2):
    """x: (B, C_in, H, W); w1: (C_out, C_in, 1, 1); w2: (2*C_out, C_out, 3, 3)."""
    B, C_in, H, W = x.shape
    C_out = w1.shape[0]
    C2 = w2.shape[0]
    assert C2 == 2 * C_out and C_in == C2, \
        "residual add requires in_channels == 2 * out_channels"
    HW = H * W
    TH = _pick_tile_rows(H, W)
    T = H // TH
    THW = TH * W

    # Fold BN scale into conv weights (bias stays); cast MXU inputs to bf16.
    s1, b1 = _fold_bn(g1, beta1, m1, v1)
    s2, b2 = _fold_bn(g2, beta2, m2, v2)
    w1m = (w1.reshape(C_out, C_in) * s1[:, None]).astype(jnp.bfloat16)
    w2s = w2.astype(jnp.float32) * s2[:, None, None, None]
    # (C2, C_out, 3, 3) -> (ky, kx, C2, C_out) -> (9, C2, C_out), ky-major tap order.
    w2m = jnp.transpose(w2s, (2, 3, 0, 1)).reshape(9, C2, C_out).astype(jnp.bfloat16)
    b1v = b1.reshape(C_out, 1).astype(jnp.float32)
    b2v = b2.reshape(C2, 1).astype(jnp.float32)

    xb = x.astype(jnp.bfloat16)
    x2 = xb.reshape(B, C_in, HW)                    # free reshape, channels x pixels

    # Per-tile halo rows: [0-pad lane | row above | row below | 0-pad lane].
    zr = jnp.zeros((B, C_in, 1, W), jnp.bfloat16)
    if T > 1:
        above = jnp.concatenate([zr, xb[:, :, TH - 1::TH, :][:, :, :T - 1, :]], axis=2)
        below = jnp.concatenate([xb[:, :, TH::TH, :], zr], axis=2)
    else:
        above = zr
        below = zr
    zc = jnp.zeros((B, C_in, T, 1), jnp.bfloat16)
    halo = jnp.concatenate([zc, above, below, zc], axis=3).transpose(0, 2, 1, 3)
    # halo: (B, T, C_in, 2W+2)

    lanes = jnp.arange(THW, dtype=jnp.int32)
    rowcol = jnp.stack([lanes // W, lanes % W], axis=0)        # (2, THW)

    ext = THW + 2 * W + 2
    est_bytes = (2 * 2 * C_in * THW                 # x tile (bf16, double buffered)
                 + 2 * 2 * C_in * (2 * W + 2)       # halo tile
                 + 2 * (C_out * C_in + 9 * C2 * C_out)   # weights (bf16, single buffer)
                 + 2 * 4 * C2 * THW                 # out tile (f32, double buffered)
                 + 2 * C_in * ext + 4 * C_out * ext + 2 * C_out * ext  # x_ext/z1/y1_ext
                 + 2 * 4 * C2 * THW)                # accumulator + tap headroom
    vmem_limit = int(min(max(4 * est_bytes, 8 * 2**20), 48 * 2**20))

    flops = 2 * B * HW * (C_out * C_in + 9 * C2 * C_out)
    bytes_accessed = (2 * B * C_in * HW + 4 * B * C2 * HW
                      + 2 * (C_out * C_in + 9 * C2 * C_out))

    def _weight_spec(shape):
        return pl.BlockSpec(shape, lambda b, t: (0,) * len(shape),
                            pipeline_mode=pl.Buffered(1))

    out = pl.pallas_call(
        functools.partial(_darknet_block_kernel, H=H, W=W, TH=TH),
        grid=(B, T),
        in_specs=[
            pl.BlockSpec((1, C_in, THW), lambda b, t: (b, 0, t)),           # x row tile
            pl.BlockSpec((1, 1, C_in, 2 * W + 2), lambda b, t: (b, t, 0, 0)),  # halo rows
            _weight_spec((C_out, C_in)),                                    # w1 (BN folded)
            _weight_spec((9, C2, C_out)),                                   # w2 per-tap
            pl.BlockSpec((C_out, 1), lambda b, t: (0, 0)),                  # bn1 bias
            pl.BlockSpec((C2, 1), lambda b, t: (0, 0)),                     # bn2 bias
            pl.BlockSpec((2, THW), lambda b, t: (0, 0)),                    # local row/col
        ],
        out_specs=pl.BlockSpec((1, C2, THW), lambda b, t: (b, 0, t)),
        out_shape=jax.ShapeDtypeStruct((B, C2, HW), jnp.float32),
        compiler_params=pltpu.CompilerParams(
            dimension_semantics=("parallel", "parallel"),
            vmem_limit_bytes=vmem_limit),
        cost_estimate=pl.CostEstimate(flops=flops, transcendentals=0,
                                      bytes_accessed=bytes_accessed),
    )(x2, halo, w1m, w2m, b1v, b2v, rowcol)

    return out.reshape(B, C2, H, W)


# ---------------------------------------------------------------------------
# Pure-JAX reference (inference-mode BN), for verification.
# ---------------------------------------------------------------------------
def darknet_block_reference(x, w1, w2, g1, beta1, m1, v1, g2, beta2, m2, v2,
                            eps=1e-5):
    dn = ("NCHW", "OIHW", "NCHW")

    def bn(y, g, b, m, v):
        inv = g / jnp.sqrt(v + eps)
        return y * inv[None, :, None, None] + (b - m * inv)[None, :, None, None]

    def lrelu(y):
        return jnp.where(y > 0, y, 0.1 * y)

    y = jax.lax.conv_general_dilated(x, w1, (1, 1), "VALID", dimension_numbers=dn)
    y = lrelu(bn(y, g1, beta1, m1, v1))
    y = jax.lax.conv_general_dilated(y, w2, (1, 1), ((1, 1), (1, 1)),
                                     dimension_numbers=dn)
    y = lrelu(bn(y, g2, beta2, m2, v2))
    return y + x


# ---------------------------------------------------------------------------
# Self-test
# ---------------------------------------------------------------------------
def _run_case(key, B, C_out, H, W):
    C_in = 2 * C_out
    C2 = 2 * C_out
    ks = jax.random.split(key, 11)
    x = jax.random.normal(ks[0], (B, C_in, H, W), jnp.float32)
    w1 = 0.2 * jax.random.normal(ks[1], (C_out, C_in, 1, 1), jnp.float32)
    w2 = 0.05 * jax.random.normal(ks[2], (C2, C_out, 3, 3), jnp.float32)
    g1 = jax.random.uniform(ks[3], (C_out,), jnp.float32, 0.5, 1.5)
    beta1 = 0.1 * jax.random.normal(ks[4], (C_out,), jnp.float32)
    m1 = 0.1 * jax.random.normal(ks[5], (C_out,), jnp.float32)
    v1 = jax.random.uniform(ks[6], (C_out,), jnp.float32, 0.5, 1.5)
    g2 = jax.random.uniform(ks[7], (C2,), jnp.float32, 0.5, 1.5)
    beta2 = 0.1 * jax.random.normal(ks[8], (C2,), jnp.float32)
    m2 = 0.1 * jax.random.normal(ks[9], (C2,), jnp.float32)
    v2 = jax.random.uniform(ks[10], (C2,), jnp.float32, 0.5, 1.5)

    args = (x, w1, w2, g1, beta1, m1, v1, g2, beta2, m2, v2)
    out = jax.block_until_ready(darknet_block(*args))
    ref = jax.block_until_ready(darknet_block_reference(*args))

    max_abs = float(jnp.max(jnp.abs(out - ref)))
    scale = max(1.0, float(jnp.max(jnp.abs(ref))))
    assert max_abs <= 2e-2 * scale, (
        f"mismatch (B={B}, C_out={C_out}, H={H}, W={W}): "
        f"max_abs_diff={max_abs} scale={scale}")


if __name__ == "__main__":
    key = jax.random.PRNGKey(0)
    k1, k2, k3 = jax.random.split(key, 3)
    _run_case(k1, B=2, C_out=32, H=16, W=16)   # 2 row tiles / image: halo + 128-lane tiles
    _run_case(k2, B=1, C_out=16, H=12, W=32)   # 3 row tiles: interior-tile halos
    _run_case(k3, B=1, C_out=8,  H=10, W=12)   # single-tile fallback, unaligned lane count
    print("KERNEL_OK")
</pallas_src>

<mosaic_0001>
module attributes {stable_mosaic.version = 11 : i64} {
  func.func @_darknet_block_kernel(%arg0: i32, %arg1: i32, %arg2: memref<1x64x128xbf16, #tpu.memory_space<vmem>>, %arg3: memref<1x1x64x34xbf16, #tpu.memory_space<vmem>>, %arg4: memref<32x64xbf16, #tpu.memory_space<vmem>>, %arg5: memref<9x64x32xbf16, #tpu.memory_space<vmem>>, %arg6: memref<32x1xf32, #tpu.memory_space<vmem>>, %arg7: memref<64x1xf32, #tpu.memory_space<vmem>>, %arg8: memref<2x128xi32, #tpu.memory_space<vmem>>, %arg9: memref<1x64x128xf32, #tpu.memory_space<vmem>>) attributes {dimension_semantics = [#tpu.dimension_semantics<parallel>, #tpu.dimension_semantics<parallel>], iteration_bounds = array<i64: 2, 2>, scalar_prefetch = 0 : i64, scratch_operands = 0 : i64, tpu.core_type = #tpu.core_type<tc>, window_params = [{transform_indices = @transform_0, window_bounds = array<i64: 1, 64, 128>}, {transform_indices = @transform_1, window_bounds = array<i64: 1, 1, 64, 34>}, {pipeline_mode = #tpu.pipeline_mode<synchronous>, transform_indices = @transform_2, window_bounds = array<i64: 32, 64>}, {pipeline_mode = #tpu.pipeline_mode<synchronous>, transform_indices = @transform_3, window_bounds = array<i64: 9, 64, 32>}, {pipeline_mode = #tpu.pipeline_mode<synchronous>, transform_indices = @transform_4, window_bounds = array<i64: 32, 1>}, {pipeline_mode = #tpu.pipeline_mode<synchronous>, transform_indices = @transform_5, window_bounds = array<i64: 64, 1>}, {pipeline_mode = #tpu.pipeline_mode<synchronous>, transform_indices = @transform_6, window_bounds = array<i64: 2, 128>}, {transform_indices = @transform_7, window_bounds = array<i64: 1, 64, 128>}]} {
    %c0 = arith.constant 0 : index
    %c0_0 = arith.constant 0 : index
    %c0_1 = arith.constant 0 : index
    %0 = vector.load %arg2[%c0, %c0_0, %c0_1] : memref<1x64x128xbf16, #tpu.memory_space<vmem>>, vector<1x64x128xbf16>
    %1 = vector.shape_cast %0 : vector<1x64x128xbf16> to vector<64x128xbf16>
    %c0_2 = arith.constant 0 : index
    %c0_3 = arith.constant 0 : index
    %c0_4 = arith.constant 0 : index
    %c0_5 = arith.constant 0 : index
    %2 = vector.load %arg3[%c0_2, %c0_3, %c0_4, %c0_5] : memref<1x1x64x34xbf16, #tpu.memory_space<vmem>>, vector<1x1x64x34xbf16>
    %3 = vector.shape_cast %2 : vector<1x1x64x34xbf16> to vector<64x34xbf16>
    %4 = vector.extract_strided_slice %3 {offsets = [0, 0], sizes = [64, 17], strides = [1, 1]} : vector<64x34xbf16> to vector<64x17xbf16>
    %5 = vector.extract_strided_slice %3 {offsets = [0, 17], sizes = [64, 17], strides = [1, 1]} : vector<64x34xbf16> to vector<64x17xbf16>
    %6 = tpu.concatenate %4, %1, %5 in 1 : vector<64x17xbf16>, vector<64x128xbf16>, vector<64x17xbf16> -> vector<64x162xbf16>
    %c0_6 = arith.constant 0 : index
    %c0_7 = arith.constant 0 : index
    %7 = vector.load %arg4[%c0_6, %c0_7] : memref<32x64xbf16, #tpu.memory_space<vmem>>, vector<32x64xbf16>
    %cst = arith.constant dense<0.000000e+00> : vector<32x162xf32>
    %8 = tpu.matmul %7, %6, %cst {dimension_numbers = #tpu.dot_dimension_numbers<[1], [0], [0], [1], [0, 0, 1, 1], [], []>} : vector<32x64xbf16>, vector<64x162xbf16>, vector<32x162xf32> -> vector<32x162xf32>
    %c0_8 = arith.constant 0 : index
    %c0_9 = arith.constant 0 : index
    %9 = vector.load %arg6[%c0_8, %c0_9] : memref<32x1xf32, #tpu.memory_space<vmem>>, vector<32x1xf32>
    %10 = vector.broadcast %9 : vector<32x1xf32> to vector<32x162xf32>
    %11 = arith.addf %8, %10 : vector<32x162xf32>
    %cst_10 = arith.constant 1.000000e-01 : f32
    %12 = vector.broadcast %cst_10 : f32 to vector<32x162xf32>
    %13 = arith.mulf %12, %11 : vector<32x162xf32>
    %14 = arith.maximumf %11, %13 : vector<32x162xf32>
    %15 = arith.truncf %14 : vector<32x162xf32> to vector<32x162xbf16>
    %c0_11 = arith.constant 0 : index
    %c0_12 = arith.constant 0 : index
    %16 = vector.load %arg8[%c0_11, %c0_12] : memref<2x128xi32, #tpu.memory_space<vmem>>, vector<2x128xi32>
    %17 = vector.extract_strided_slice %16 {offsets = [0, 0], sizes = [1, 128], strides = [1, 1]} : vector<2x128xi32> to vector<1x128xi32>
    %c8_i32 = arith.constant 8 : i32
    %18 = arith.muli %arg1, %c8_i32 : i32
    %19 = vector.broadcast %18 : i32 to vector<1x128xi32>
    %20 = arith.addi %17, %19 : vector<1x128xi32>
    %21 = vector.extract_strided_slice %16 {offsets = [1, 0], sizes = [1, 128], strides = [1, 1]} : vector<2x128xi32> to vector<1x128xi32>
    %c1_i32 = arith.constant 1 : i32
    %22 = vector.broadcast %c1_i32 : i32 to vector<1x128xi32>
    %23 = arith.cmpi sge, %20, %22 : vector<1x128xi32>
    %c14_i32 = arith.constant 14 : i32
    %24 = vector.broadcast %c14_i32 : i32 to vector<1x128xi32>
    %25 = arith.cmpi sle, %20, %24 : vector<1x128xi32>
    %c1_i32_13 = arith.constant 1 : i32
    %26 = vector.broadcast %c1_i32_13 : i32 to vector<1x128xi32>
    %27 = arith.cmpi sge, %21, %26 : vector<1x128xi32>
    %c14_i32_14 = arith.constant 14 : i32
    %28 = vector.broadcast %c14_i32_14 : i32 to vector<1x128xi32>
    %29 = arith.cmpi sle, %21, %28 : vector<1x128xi32>
    %30 = vector.extract_strided_slice %15 {offsets = [0, 0], sizes = [32, 128], strides = [1, 1]} : vector<32x162xbf16> to vector<32x128xbf16>
    %31 = arith.andi %23, %27 : vector<1x128xi1>
    %c0_i32 = arith.constant 0 : i32
    %32 = arith.sitofp %c0_i32 : i32 to bf16
    %33 = vector.shape_cast %31 : vector<1x128xi1> to vector<1x128xi1>
    %34 = vector.broadcast %33 : vector<1x128xi1> to vector<32x128xi1>
    %35 = vector.broadcast %32 : bf16 to vector<32x128xbf16>
    %36 = arith.select %34, %30, %35 : vector<32x128xi1>, vector<32x128xbf16>
    %c0_15 = arith.constant 0 : index
    %c0_16 = arith.constant 0 : index
    %c0_17 = arith.constant 0 : index
    %37 = vector.load %arg5[%c0_15, %c0_16, %c0_17] : memref<9x64x32xbf16, #tpu.memory_space<vmem>>, vector<1x64x32xbf16>
    %38 = vector.shape_cast %37 : vector<1x64x32xbf16> to vector<64x32xbf16>
    %cst_18 = arith.constant dense<0.000000e+00> : vector<64x128xf32>
    %39 = tpu.matmul %38, %36, %cst_18 {dimension_numbers = #tpu.dot_dimension_numbers<[1], [0], [0], [1], [0, 0, 1, 1], [], []>} : vector<64x32xbf16>, vector<32x128xbf16>, vector<64x128xf32> -> vector<64x128xf32>
    %40 = vector.extract_strided_slice %15 {offsets = [0, 1], sizes = [32, 128], strides = [1, 1]} : vector<32x162xbf16> to vector<32x128xbf16>
    %c0_i32_19 = arith.constant 0 : i32
    %41 = arith.sitofp %c0_i32_19 : i32 to bf16
    %42 = vector.shape_cast %23 : vector<1x128xi1> to vector<1x128xi1>
    %43 = vector.broadcast %42 : vector<1x128xi1> to vector<32x128xi1>
    %44 = vector.broadcast %41 : bf16 to vector<32x128xbf16>
    %45 = arith.select %43, %40, %44 : vector<32x128xi1>, vector<32x128xbf16>
    %c1 = arith.constant 1 : index
    %c0_20 = arith.constant 0 : index
    %c0_21 = arith.constant 0 : index
    %46 = vector.load %arg5[%c1, %c0_20, %c0_21] : memref<9x64x32xbf16, #tpu.memory_space<vmem>>, vector<1x64x32xbf16>
    %47 = vector.shape_cast %46 : vector<1x64x32xbf16> to vector<64x32xbf16>
    %cst_22 = arith.constant dense<0.000000e+00> : vector<64x128xf32>
    %48 = tpu.matmul %47, %45, %cst_22 {dimension_numbers = #tpu.dot_dimension_numbers<[1], [0], [0], [1], [0, 0, 1, 1], [], []>} : vector<64x32xbf16>, vector<32x128xbf16>, vector<64x128xf32> -> vector<64x128xf32>
    %49 = arith.addf %39, %48 : vector<64x128xf32>
    %50 = vector.extract_strided_slice %15 {offsets = [0, 2], sizes = [32, 128], strides = [1, 1]} : vector<32x162xbf16> to vector<32x128xbf16>
    %51 = arith.andi %23, %29 : vector<1x128xi1>
    %c0_i32_23 = arith.constant 0 : i32
    %52 = arith.sitofp %c0_i32_23 : i32 to bf16
    %53 = vector.shape_cast %51 : vector<1x128xi1> to vector<1x128xi1>
    %54 = vector.broadcast %53 : vector<1x128xi1> to vector<32x128xi1>
    %55 = vector.broadcast %52 : bf16 to vector<32x128xbf16>
    %56 = arith.select %54, %50, %55 : vector<32x128xi1>, vector<32x128xbf16>
    %c2 = arith.constant 2 : index
    %c0_24 = arith.constant 0 : index
    %c0_25 = arith.constant 0 : index
    %57 = vector.load %arg5[%c2, %c0_24, %c0_25] : memref<9x64x32xbf16, #tpu.memory_space<vmem>>, vector<1x64x32xbf16>
    %58 = vector.shape_cast %57 : vector<1x64x32xbf16> to vector<64x32xbf16>
    %cst_26 = arith.constant dense<0.000000e+00> : vector<64x128xf32>
    %59 = tpu.matmul %58, %56, %cst_26 {dimension_numbers = #tpu.dot_dimension_numbers<[1], [0], [0], [1], [0, 0, 1, 1], [], []>} : vector<64x32xbf16>, vector<32x128xbf16>, vector<64x128xf32> -> vector<64x128xf32>
    %60 = arith.addf %49, %59 : vector<64x128xf32>
    %61 = vector.extract_strided_slice %15 {offsets = [0, 16], sizes = [32, 128], strides = [1, 1]} : vector<32x162xbf16> to vector<32x128xbf16>
    %c0_i32_27 = arith.constant 0 : i32
    %62 = arith.sitofp %c0_i32_27 : i32 to bf16
    %63 = vector.shape_cast %27 : vector<1x128xi1> to vector<1x128xi1>
    %64 = vector.broadcast %63 : vector<1x128xi1> to vector<32x128xi1>
    %65 = vector.broadcast %62 : bf16 to vector<32x128xbf16>
    %66 = arith.select %64, %61, %65 : vector<32x128xi1>, vector<32x128xbf16>
    %c3 = arith.constant 3 : index
    %c0_28 = arith.constant 0 : index
    %c0_29 = arith.constant 0 : index
    %67 = vector.load %arg5[%c3, %c0_28, %c0_29] : memref<9x64x32xbf16, #tpu.memory_space<vmem>>, vector<1x64x32xbf16>
    %68 = vector.shape_cast %67 : vector<1x64x32xbf16> to vector<64x32xbf16>
    %cst_30 = arith.constant dense<0.000000e+00> : vector<64x128xf32>
    %69 = tpu.matmul %68, %66, %cst_30 {dimension_numbers = #tpu.dot_dimension_numbers<[1], [0], [0], [1], [0, 0, 1, 1], [], []>} : vector<64x32xbf16>, vector<32x128xbf16>, vector<64x128xf32> -> vector<64x128xf32>
    %70 = arith.addf %60, %69 : vector<64x128xf32>
    %71 = vector.extract_strided_slice %15 {offsets = [0, 17], sizes = [32, 128], strides = [1, 1]} : vector<32x162xbf16> to vector<32x128xbf16>
    %c4 = arith.constant 4 : index
    %c0_31 = arith.constant 0 : index
    %c0_32 = arith.constant 0 : index
    %72 = vector.load %arg5[%c4, %c0_31, %c0_32] : memref<9x64x32xbf16, #tpu.memory_space<vmem>>, vector<1x64x32xbf16>
    %73 = vector.shape_cast %72 : vector<1x64x32xbf16> to vector<64x32xbf16>
    %cst_33 = arith.constant dense<0.000000e+00> : vector<64x128xf32>
    %74 = tpu.matmul %73, %71, %cst_33 {dimension_numbers = #tpu.dot_dimension_numbers<[1], [0], [0], [1], [0, 0, 1, 1], [], []>} : vector<64x32xbf16>, vector<32x128xbf16>, vector<64x128xf32> -> vector<64x128xf32>
    %75 = arith.addf %70, %74 : vector<64x128xf32>
    %76 = vector.extract_strided_slice %15 {offsets = [0, 18], sizes = [32, 128], strides = [1, 1]} : vector<32x162xbf16> to vector<32x128xbf16>
    %c0_i32_34 = arith.constant 0 : i32
    %77 = arith.sitofp %c0_i32_34 : i32 to bf16
    %78 = vector.shape_cast %29 : vector<1x128xi1> to vector<1x128xi1>
    %79 = vector.broadcast %78 : vector<1x128xi1> to vector<32x128xi1>
    %80 = vector.broadcast %77 : bf16 to vector<32x128xbf16>
    %81 = arith.select %79, %76, %80 : vector<32x128xi1>, vector<32x128xbf16>
    %c5 = arith.constant 5 : index
    %c0_35 = arith.constant 0 : index
    %c0_36 = arith.constant 0 : index
    %82 = vector.load %arg5[%c5, %c0_35, %c0_36] : memref<9x64x32xbf16, #tpu.memory_space<vmem>>, vector<1x64x32xbf16>
    %83 = vector.shape_cast %82 : vector<1x64x32xbf16> to vector<64x32xbf16>
    %cst_37 = arith.constant dense<0.000000e+00> : vector<64x128xf32>
    %84 = tpu.matmul %83, %81, %cst_37 {dimension_numbers = #tpu.dot_dimension_numbers<[1], [0], [0], [1], [0, 0, 1, 1], [], []>} : vector<64x32xbf16>, vector<32x128xbf16>, vector<64x128xf32> -> vector<64x128xf32>
    %85 = arith.addf %75, %84 : vector<64x128xf32>
    %86 = vector.extract_strided_slice %15 {offsets = [0, 32], sizes = [32, 128], strides = [1, 1]} : vector<32x162xbf16> to vector<32x128xbf16>
    %87 = arith.andi %25, %27 : vector<1x128xi1>
    %c0_i32_38 = arith.constant 0 : i32
    %88 = arith.sitofp %c0_i32_38 : i32 to bf16
    %89 = vector.shape_cast %87 : vector<1x128xi1> to vector<1x128xi1>
    %90 = vector.broadcast %89 : vector<1x128xi1> to vector<32x128xi1>
    %91 = vector.broadcast %88 : bf16 to vector<32x128xbf16>
    %92 = arith.select %90, %86, %91 : vector<32x128xi1>, vector<32x128xbf16>
    %c6 = arith.constant 6 : index
    %c0_39 = arith.constant 0 : index
    %c0_40 = arith.constant 0 : index
    %93 = vector.load %arg5[%c6, %c0_39, %c0_40] : memref<9x64x32xbf16, #tpu.memory_space<vmem>>, vector<1x64x32xbf16>
    %94 = vector.shape_cast %93 : vector<1x64x32xbf16> to vector<64x32xbf16>
    %cst_41 = arith.constant dense<0.000000e+00> : vector<64x128xf32>
    %95 = tpu.matmul %94, %92, %cst_41 {dimension_numbers = #tpu.dot_dimension_numbers<[1], [0], [0], [1], [0, 0, 1, 1], [], []>} : vector<64x32xbf16>, vector<32x128xbf16>, vector<64x128xf32> -> vector<64x128xf32>
    %96 = arith.addf %85, %95 : vector<64x128xf32>
    %97 = vector.extract_strided_slice %15 {offsets = [0, 33], sizes = [32, 128], strides = [1, 1]} : vector<32x162xbf16> to vector<32x128xbf16>
    %c0_i32_42 = arith.constant 0 : i32
    %98 = arith.sitofp %c0_i32_42 : i32 to bf16
    %99 = vector.shape_cast %25 : vector<1x128xi1> to vector<1x128xi1>
    %100 = vector.broadcast %99 : vector<1x128xi1> to vector<32x128xi1>
    %101 = vector.broadcast %98 : bf16 to vector<32x128xbf16>
    %102 = arith.select %100, %97, %101 : vector<32x128xi1>, vector<32x128xbf16>
    %c7 = arith.constant 7 : index
    %c0_43 = arith.constant 0 : index
    %c0_44 = arith.constant 0 : index
    %103 = vector.load %arg5[%c7, %c0_43, %c0_44] : memref<9x64x32xbf16, #tpu.memory_space<vmem>>, vector<1x64x32xbf16>
    %104 = vector.shape_cast %103 : vector<1x64x32xbf16> to vector<64x32xbf16>
    %cst_45 = arith.constant dense<0.000000e+00> : vector<64x128xf32>
    %105 = tpu.matmul %104, %102, %cst_45 {dimension_numbers = #tpu.dot_dimension_numbers<[1], [0], [0], [1], [0, 0, 1, 1], [], []>} : vector<64x32xbf16>, vector<32x128xbf16>, vector<64x128xf32> -> vector<64x128xf32>
    %106 = arith.addf %96, %105 : vector<64x128xf32>
    %107 = vector.extract_strided_slice %15 {offsets = [0, 34], sizes = [32, 128], strides = [1, 1]} : vector<32x162xbf16> to vector<32x128xbf16>
    %108 = arith.andi %25, %29 : vector<1x128xi1>
    %c0_i32_46 = arith.constant 0 : i32
    %109 = arith.sitofp %c0_i32_46 : i32 to bf16
    %110 = vector.shape_cast %108 : vector<1x128xi1> to vector<1x128xi1>
    %111 = vector.broadcast %110 : vector<1x128xi1> to vector<32x128xi1>
    %112 = vector.broadcast %109 : bf16 to vector<32x128xbf16>
    %113 = arith.select %111, %107, %112 : vector<32x128xi1>, vector<32x128xbf16>
    %c8 = arith.constant 8 : index
    %c0_47 = arith.constant 0 : index
    %c0_48 = arith.constant 0 : index
    %114 = vector.load %arg5[%c8, %c0_47, %c0_48] : memref<9x64x32xbf16, #tpu.memory_space<vmem>>, vector<1x64x32xbf16>
    %115 = vector.shape_cast %114 : vector<1x64x32xbf16> to vector<64x32xbf16>
    %cst_49 = arith.constant dense<0.000000e+00> : vector<64x128xf32>
    %116 = tpu.matmul %115, %113, %cst_49 {dimension_numbers = #tpu.dot_dimension_numbers<[1], [0], [0], [1], [0, 0, 1, 1], [], []>} : vector<64x32xbf16>, vector<32x128xbf16>, vector<64x128xf32> -> vector<64x128xf32>
    %117 = arith.addf %106, %116 : vector<64x128xf32>
    %c0_50 = arith.constant 0 : index
    %c0_51 = arith.constant 0 : index
    %118 = vector.load %arg7[%c0_50, %c0_51] : memref<64x1xf32, #tpu.memory_space<vmem>>, vector<64x1xf32>
    %119 = vector.broadcast %118 : vector<64x1xf32> to vector<64x128xf32>
    %120 = arith.addf %117, %119 : vector<64x128xf32>
    %cst_52 = arith.constant 1.000000e-01 : f32
    %121 = vector.broadcast %cst_52 : f32 to vector<64x128xf32>
    %122 = arith.mulf %121, %120 : vector<64x128xf32>
    %123 = arith.maximumf %120, %122 : vector<64x128xf32>
    %124 = arith.extf %1 : vector<64x128xbf16> to vector<64x128xf32>
    %125 = arith.addf %123, %124 : vector<64x128xf32>
    %c0_53 = arith.constant 0 : index
    %c0_54 = arith.constant 0 : index
    %c0_55 = arith.constant 0 : index
    %126 = vector.load %arg9[%c0_53, %c0_54, %c0_55] : memref<1x64x128xf32, #tpu.memory_space<vmem>>, vector<1x64x128xf32>
    %127 = vector.shape_cast %126 : vector<1x64x128xf32> to vector<64x128xf32>
    %128 = vector.shape_cast %125 : vector<64x128xf32> to vector<1x64x128xf32>
    tpu.vector_store %arg9[%c0_53, %c0_54, %c0_55], %128 {strides = array<i32>} : memref<1x64x128xf32, #tpu.memory_space<vmem>>, vector<1x64x128xf32>,
    return
  }
  func.func @transform_0(%arg0: i32, %arg1: i32) -> (i32, i32, i32) {
    %c0_i32 = arith.constant 0 : i32
    %c0_i32_0 = arith.constant 0 : i32
    return %arg0, %c0_i32, %arg1 : i32, i32, i32
  }
  func.func @transform_1(%arg0: i32, %arg1: i32) -> (i32, i32, i32, i32) {
    %c0_i32 = arith.constant 0 : i32
    %c0_i32_0 = arith.constant 0 : i32
    %c0_i32_1 = arith.constant 0 : i32
    return %arg0, %arg1, %c0_i32, %c0_i32_0 : i32, i32, i32, i32
  }
  func.func @transform_2(%arg0: i32, %arg1: i32) -> (i32, i32) {
    %c0_i32 = arith.constant 0 : i32
    %c0_i32_0 = arith.constant 0 : i32
    %c0_i32_1 = arith.constant 0 : i32
    return %c0_i32, %c0_i32_0 : i32, i32
  }
  func.func @transform_3(%arg0: i32, %arg1: i32) -> (i32, i32, i32) {
    %c0_i32 = arith.constant 0 : i32
    %c0_i32_0 = arith.constant 0 : i32
    %c0_i32_1 = arith.constant 0 : i32
    %c0_i32_2 = arith.constant 0 : i32
    return %c0_i32, %c0_i32_0, %c0_i32_1 : i32, i32, i32
  }
  func.func @transform_4(%arg0: i32, %arg1: i32) -> (i32, i32) {
    %c0_i32 = arith.constant 0 : i32
    %c0_i32_0 = arith.constant 0 : i32
    %c0_i32_1 = arith.constant 0 : i32
    return %c0_i32, %c0_i32_0 : i32, i32
  }
  func.func @transform_5(%arg0: i32, %arg1: i32) -> (i32, i32) {
    %c0_i32 = arith.constant 0 : i32
    %c0_i32_0 = arith.constant 0 : i32
    %c0_i32_1 = arith.constant 0 : i32
    return %c0_i32, %c0_i32_0 : i32, i32
  }
  func.func @transform_6(%arg0: i32, %arg1: i32) -> (i32, i32) {
    %c0_i32 = arith.constant 0 : i32
    %c0_i32_0 = arith.constant 0 : i32
    %c0_i32_1 = arith.constant 0 : i32
    return %c0_i32, %c0_i32_0 : i32, i32
  }
  func.func @transform_7(%arg0: i32, %arg1: i32) -> (i32, i32, i32) {
    %c0_i32 = arith.constant 0 : i32
    %c0_i32_0 = arith.constant 0 : i32
    return %arg0, %c0_i32, %arg1 : i32, i32, i32
  }
}

</mosaic_0001>

<llo_original>
// kernel: darknet_block.1
$region0: #{darknet_block.1}
  #allocation0 [shape = 'u32[]', space=smem, size = 0x4, offset = 0x4, fixed_abs, tag = 'smem constant byte address 0x4 - core index']
  #allocation1 [shape = 'u32[72,128]{1,0:T(1,128)}', space=vmem, size = 0x9000, scoped, tag = 'internal scratch']
  %s0 = inlined_call_operand.vmem [shape: bf16[2,64,256], index: 0, kind: input, shape index: {}]
  %s1 = inlined_call_operand.vmem [shape: bf16[2,2,64,34], index: 1, kind: input, shape index: {}]
  %s2 = inlined_call_operand.vmem [shape: bf16[32,64], index: 2, kind: input, shape index: {}]
  %s3 = inlined_call_operand.vmem [shape: bf16[9,64,32], index: 3, kind: input, shape index: {}]
  %s4 = inlined_call_operand.vmem [shape: f32[32,1], index: 4, kind: input, shape index: {}]
  %s5 = inlined_call_operand.vmem [shape: f32[64,1], index: 5, kind: input, shape index: {}]
  %s6 = inlined_call_operand.vmem [shape: s32[2,128], index: 6, kind: input, shape index: {}]
  %s7 = inlined_call_operand.vmem [shape: f32[2,64,256], index: 7, kind: output, shape index: {}]
  %s8 = sld [smem:[#allocation0]]
  $region136: #{darknet_block.1} parent=0
    _
  %s10 = ssub.s32 1, %s8
  %s11 = scalar_select 0, %s10, %s8
  $region1: #{darknet_block.1} parent=0
    #allocation2 [shape = 'u8[32768]{0}', space=vmem, size = 0x8000, scoped, tag = 'input window, operand 0']
    #allocation3 [shape = 'u8[65536]{0}', space=vmem, size = 0x10000, scoped, tag = 'output window, operand 0']
    loop: start=0, step=1, limit=6
    $region2: #{darknet_block.1} parent=1 // loop_pre_header
      _
    $region3: #{darknet_block.1} parent=1 // loop_header
      %s13 = sphi 0, %s17
      %p14 = scmp.ge.s32.totalorder %s13, 6
      %s20 = sphi 0, %s32
      %s21 = sphi 0, %s28
      %s22 = sphi 0, %s20
      %s23 = sphi 0, %s21
      %s24 = sphi 0, %s22
      %s25 = sphi 0, %s23
      %s37 = sphi 0, %s39
      %s40 = sphi 0, %s37
      %s41 = sphi 0, %s40
      %s57 = sphi 0, %s41
      %s65 = sphi 0, %s67
      %s68 = sphi 0, %s65
      %s69 = sphi 0, %s68
      %s85 = sphi 0, %s69
      %s89 = sphi 0, %s89
      %s91 = sphi 0, %s89
      %s92 = sphi 0, %s91
      %s106 = sphi 0, %s92
      %s110 = sphi 0, %s110
      %s112 = sphi 0, %s110
      %s113 = sphi 0, %s112
      %s127 = sphi 0, %s113
      %s131 = sphi 0, %s131
      %s133 = sphi 0, %s131
      %s134 = sphi 0, %s133
      %s148 = sphi 0, %s134
      %s152 = sphi 0, %s152
      %s154 = sphi 0, %s152
      %s155 = sphi 0, %s154
      %s169 = sphi 0, %s155
      %s173 = sphi 0, %s173
      %s175 = sphi 0, %s173
      %s176 = sphi 0, %s175
      %s190 = sphi 0, %s176
      %s198 = sphi 0, %s200
      %s201 = sphi 0, %s198
      %s202 = sphi 0, %s201
      %s218 = sphi 0, %s202
    $region4: #{darknet_block.1} parent=1 // loop_header_branch
      %16 = sbr.rel (%p14) target = $region8
    $region5: #{darknet_block.1} parent=1 // loop_body
      %s18 = ssub.s32 %s13, 1
      %s19 = ssub.s32 %s13, 2
      %s26 = sadd.s32 1, %s21
      %p27 = scmp.ge.s32.totalorder %s26, 2
      %s28 = scalar_select %p27, 0, %s26
      %s29 = sadd.s32 1, %s20
      %s30 = scalar_select %p27, %s29, %s20
      %p31 = scmp.ge.s32.totalorder %s30, 2
      %s32 = scalar_select %p31, 0, %s30
      %s33 = ssub.s32 %s20, %s32
      %s34 = ssub.s32 %s21, %s28
      %s35 = sor.u32 %s33, %s34
      %p36 = scmp.eq.s32.totalorder %s35, 0
      %s38 = sadd.s32 %s37, 1
      %s39 = scalar_select %p36, %s37, %s38
      %p42 = pneg %p36
      %p43 = scmp.eq.s32.totalorder %s13, 3
      %p44 = por %p42, %p43
      %p45 = scmp.ne.s32.totalorder %s37, %s40
      %p46 = scmp.eq.s32.totalorder %s13, 0
      %p47 = por %p45, %p46
      %p48 = scmp.ne.s32.totalorder %s37, %s40
      %p49 = scmp.eq.s32.totalorder %s18, 3
      %p50 = por %p48, %p49
      %p51 = scmp.ne.s32.totalorder %s40, %s41
      %p52 = scmp.eq.s32.totalorder %s18, 0
      %p53 = por %p51, %p52
      %p54 = scmp.ne.s32.totalorder %s40, %s41
      %p55 = scmp.eq.s32.totalorder %s19, 3
      %p56 = por %p54, %p55
      %p58 = scmp.ne.s32.totalorder %s41, %s57
      %p59 = scmp.eq.s32.totalorder %s19, 0
      %p60 = por %p58, %p59
      %s61 = ssub.s32 %s20, %s32
      %s62 = ssub.s32 %s21, %s28
      %s63 = sor.u32 %s61, %s62
      %p64 = scmp.eq.s32.totalorder %s63, 0
      %s66 = sadd.s32 %s65, 1
      %s67 = scalar_select %p64, %s65, %s66
      %p70 = pneg %p64
      %p71 = scmp.eq.s32.totalorder %s13, 3
      %p72 = por %p70, %p71
      %p73 = scmp.ne.s32.totalorder %s65, %s68
      %p74 = scmp.eq.s32.totalorder %s13, 0
      %p75 = por %p73, %p74
      %p76 = scmp.ne.s32.totalorder %s65, %s68
      %p77 = scmp.eq.s32.totalorder %s18, 3
      %p78 = por %p76, %p77
      %p79 = scmp.ne.s32.totalorder %s68, %s69
      %p80 = scmp.eq.s32.totalorder %s18, 0
      %p81 = por %p79, %p80
      %p82 = scmp.ne.s32.totalorder %s68, %s69
      %p83 = scmp.eq.s32.totalorder %s19, 3
      %p84 = por %p82, %p83
      %p86 = scmp.ne.s32.totalorder %s69, %s85
      %p87 = scmp.eq.s32.totalorder %s19, 0
      %p88 = por %p86, %p87
      %s90 = sadd.s32 %s89, 1
      %p93 = scmp.eq.s32.totalorder %s13, 3
      %p94 = scmp.ne.s32.totalorder %s89, %s91
      %p95 = scmp.eq.s32.totalorder %s13, 0
      %p96 = por %p94, %p95
      %p97 = scmp.ne.s32.totalorder %s89, %s91
      %p98 = scmp.eq.s32.totalorder %s18, 3
      %p99 = por %p97, %p98
      %p100 = scmp.ne.s32.totalorder %s91, %s92
      %p101 = scmp.eq.s32.totalorder %s18, 0
      %p102 = por %p100, %p101
      %p103 = scmp.ne.s32.totalorder %s91, %s92
      %p104 = scmp.eq.s32.totalorder %s19, 3
      %p105 = por %p103, %p104
      %p107 = scmp.ne.s32.totalorder %s92, %s106
      %p108 = scmp.eq.s32.totalorder %s19, 0
      %p109 = por %p107, %p108
      %s111 = sadd.s32 %s110, 1
      %p114 = scmp.eq.s32.totalorder %s13, 3
      %p115 = scmp.ne.s32.totalorder %s110, %s112
      %p116 = scmp.eq.s32.totalorder %s13, 0
      %p117 = por %p115, %p116
      %p118 = scmp.ne.s32.totalorder %s110, %s112
      %p119 = scmp.eq.s32.totalorder %s18, 3
      %p120 = por %p118, %p119
      %p121 = scmp.ne.s32.totalorder %s112, %s113
      %p122 = scmp.eq.s32.totalorder %s18, 0
      %p123 = por %p121, %p122
      %p124 = scmp.ne.s32.totalorder %s112, %s113
      %p125 = scmp.eq.s32.totalorder %s19, 3
      %p126 = por %p124, %p125
      %p128 = scmp.ne.s32.totalorder %s113, %s127
      %p129 = scmp.eq.s32.totalorder %s19, 0
      %p130 = por %p128, %p129
      %s132 = sadd.s32 %s131, 1
      %p135 = scmp.eq.s32.totalorder %s13, 3
      %p136 = scmp.ne.s32.totalorder %s131, %s133
      %p137 = scmp.eq.s32.totalorder %s13, 0
      %p138 = por %p136, %p137
      %p139 = scmp.ne.s32.totalorder %s131, %s133
      %p140 = scmp.eq.s32.totalorder %s18, 3
      %p141 = por %p139, %p140
      %p142 = scmp.ne.s32.totalorder %s133, %s134
      %p143 = scmp.eq.s32.totalorder %s18, 0
      %p144 = por %p142, %p143
      %p145 = scmp.ne.s32.totalorder %s133, %s134
      %p146 = scmp.eq.s32.totalorder %s19, 3
      %p147 = por %p145, %p146
      %p149 = scmp.ne.s32.totalorder %s134, %s148
      %p150 = scmp.eq.s32.totalorder %s19, 0
      %p151 = por %p149, %p150
      %s153 = sadd.s32 %s152, 1
      %p156 = scmp.eq.s32.totalorder %s13, 3
      %p157 = scmp.ne.s32.totalorder %s152, %s154
      %p158 = scmp.eq.s32.totalorder %s13, 0
      %p159 = por %p157, %p158
      %p160 = scmp.ne.s32.totalorder %s152, %s154
      %p161 = scmp.eq.s32.totalorder %s18, 3
      %p162 = por %p160, %p161
      %p163 = scmp.ne.s32.totalorder %s154, %s155
      %p164 = scmp.eq.s32.totalorder %s18, 0
      %p165 = por %p163, %p164
      %p166 = scmp.ne.s32.totalorder %s154, %s155
      %p167 = scmp.eq.s32.totalorder %s19, 3
      %p168 = por %p166, %p167
      %p170 = scmp.ne.s32.totalorder %s155, %s169
      %p171 = scmp.eq.s32.totalorder %s19, 0
      %p172 = por %p170, %p171
      %s174 = sadd.s32 %s173, 1
      %p177 = scmp.eq.s32.totalorder %s13, 3
      %p178 = scmp.ne.s32.totalorder %s173, %s175
      %p179 = scmp.eq.s32.totalorder %s13, 0
      %p180 = por %p178, %p179
      %p181 = scmp.ne.s32.totalorder %s173, %s175
      %p182 = scmp.eq.s32.totalorder %s18, 3
      %p183 = por %p181, %p182
      %p184 = scmp.ne.s32.totalorder %s175, %s176
      %p185 = scmp.eq.s32.totalorder %s18, 0
      %p186 = por %p184, %p185
      %p187 = scmp.ne.s32.totalorder %s175, %s176
      %p188 = scmp.eq.s32.totalorder %s19, 3
      %p189 = por %p187, %p188
      %p191 = scmp.ne.s32.totalorder %s176, %s190
      %p192 = scmp.eq.s32.totalorder %s19, 0
      %p193 = por %p191, %p192
      %s194 = ssub.s32 %s20, %s32
      %s195 = ssub.s32 %s21, %s28
      %s196 = sor.u32 %s194, %s195
      %p197 = scmp.eq.s32.totalorder %s196, 0
      %s199 = sadd.s32 %s198, 1
      %s200 = scalar_select %p197, %s198, %s199
      %p203 = pneg %p197
      %p204 = scmp.eq.s32.totalorder %s13, 3
      %p205 = por %p203, %p204
      %p206 = scmp.ne.s32.totalorder %s198, %s201
      %p207 = scmp.eq.s32.totalorder %s13, 0
      %p208 = por %p206, %p207
      %p209 = scmp.ne.s32.totalorder %s198, %s201
      %p210 = scmp.eq.s32.totalorder %s18, 3
      %p211 = por %p209, %p210
      %p212 = scmp.ne.s32.totalorder %s201, %s202
      %p213 = scmp.eq.s32.totalorder %s18, 0
      %p214 = por %p212, %p213
      %p215 = scmp.ne.s32.totalorder %s201, %s202
      %p216 = scmp.eq.s32.totalorder %s19, 3
      %p217 = por %p215, %p216
      %p219 = scmp.ne.s32.totalorder %s202, %s218
      %p220 = scmp.eq.s32.totalorder %s19, 0
      %p221 = por %p219, %p220
      %p222 = scmp.le.s32.totalorder 1, %s13
      %p223 = scmp.lt.s32.totalorder %s13, 5
      %p224 = pnand %p222, %p223
      %p225 = pneg %p224
      // Predicated region
      $region9: #{darknet_block.1} parent=5 // pred_check
        _
      $region10: #{darknet_block.1} parent=5 // pred_check_branch
        %227 = sbr.rel (%p224) target = $region12
      $region11: #{darknet_block.1} parent=5 // pred_region
        %s228 = ssub.s32 %s13, 1
        // Predicated region
        $region13: #{darknet_block.1} parent=11 // pred_check
          %p229 = pneg %p102
        $region14: #{darknet_block.1} parent=11 // pred_check_branch
          %231 = sbr.rel (%p229) target = $region16
        $region15: #{darknet_block.1} parent=11 // pred_region
          _
        $region16: #{darknet_block.1} parent=11 // pred_fallthru
          _
        // Predicated region
        $region17: #{darknet_block.1} parent=11 // pred_check
          %p232 = pneg %p123
        $region18: #{darknet_block.1} parent=11 // pred_check_branch
          %234 = sbr.rel (%p232) target = $region20
        $region19: #{darknet_block.1} parent=11 // pred_region
          _
        $region20: #{darknet_block.1} parent=11 // pred_fallthru
          _
        // Predicated region
        $region21: #{darknet_block.1} parent=11 // pred_check
          %p235 = pneg %p144
        $region22: #{darknet_block.1} parent=11 // pred_check_branch
          %237 = sbr.rel (%p235) target = $region24
        $region23: #{darknet_block.1} parent=11 // pred_region
          _
        $region24: #{darknet_block.1} parent=11 // pred_fallthru
          _
        // Predicated region
        $region25: #{darknet_block.1} parent=11 // pred_check
          %p238 = pneg %p165
        $region26: #{darknet_block.1} parent=11 // pred_check_branch
          %240 = sbr.rel (%p238) target = $region28
        $region27: #{darknet_block.1} parent=11 // pred_region
          _
        $region28: #{darknet_block.1} parent=11 // pred_fallthru
          _
        // Predicated region
        $region29: #{darknet_block.1} parent=11 // pred_check
          %p241 = pneg %p186
        $region30: #{darknet_block.1} parent=11 // pred_check_branch
          %243 = sbr.rel (%p241) target = $region32
        $region31: #{darknet_block.1} parent=11 // pred_region
          _
        $region32: #{darknet_block.1} parent=11 // pred_fallthru
          _
      $region12: #{darknet_block.1} parent=5 // pred_fallthru
        _
      %p244 = scmp.lt.s32.totalorder %s13, 4
      // Predicated region
      $region33: #{darknet_block.1} parent=5 // pred_check
        %p245 = pneg %p244
      $region34: #{darknet_block.1} parent=5 // pred_check_branch
        %247 = sbr.rel (%p245) target = $region36
      $region35: #{darknet_block.1} parent=5 // pred_region
        // Predicated region
        $region37: #{darknet_block.1} parent=35 // pred_check
          %p248 = pneg %p47
        $region38: #{darknet_block.1} parent=35 // pred_check_branch
          %250 = sbr.rel (%p248) target = $region40
        $region39: #{darknet_block.1} parent=35 // pred_region
          %s251 = sand.u32 %s37, 1
          %s252 = sand.u32 %s37, 1
          %s253 = smul.addr %s252, 32
          %s254 = scalar_lea.vmem [#allocation2], %s253
          %s255 = smul.addr %s20, 16
          %s256 = sadd.s32 %s21, %s255
          %s257 = smul.addr %s256, 4
          %s258 = scalar_lea.vmem %s0, %s257
          // Predicated region
          $region41: #{darknet_block.1} parent=39 // pred_check
            _
          $region42: #{darknet_block.1} parent=39 // pred_check_branch
            %260 = sbr.rel (0) target = $region44
          $region43: #{darknet_block.1} parent=39 // pred_region
            // Predicated region
            $region45: #{darknet_block.1} parent=43 // pred_check
              _
            $region46: #{darknet_block.1} parent=43 // pred_check_branch
              %262 = sbr.rel target = $region48
            $region47: #{darknet_block.1} parent=43 // pred_region
              // Predicated region
              $region60: #{darknet_block.1} parent=47 // pred_check
                _
              $region61: #{darknet_block.1} parent=47 // pred_check_branch
                %292 = sbr.rel (0) target = $region63
              $region62: #{darknet_block.1} parent=47 // pred_region
                loop: start=0, step=1, limit=1
                $region64: #{darknet_block.1} parent=62 // loop_pre_header
                  _
                $region65: #{darknet_block.1} parent=62 // loop_header
                  %s294 = sphi 0, %s298
                  %p295 = scmp.ge.s32.totalorder %s294, 1
                  %s299 = sphi %s258, %s258
                  %s300 = sphi %s254, %s254
                $region66: #{darknet_block.1} parent=62 // loop_header_branch
                  %297 = sbr.rel (%p295) target = $region70
                $region67: #{darknet_block.1} parent=62 // loop_body
                  _
                $region68: #{darknet_block.1} parent=62 // loop_footer
                  %s298 = sadd.s32 1, %s294
                $region69: #{darknet_block.1} parent=62 // loop_footer_branch
                  %293 = sbr.rel target = $region65
                $region70: #{darknet_block.1} parent=62 // loop_exit
                  _
                %s302 = ssub.s32 16, 1
                loop: start=0, step=1, limit=1
                $region71: #{darknet_block.1} parent=62 // loop_pre_header
                  _
                $region72: #{darknet_block.1} parent=62 // loop_header
                  %s304 = sphi 0, %s308
                  %p305 = scmp.ge.s32.totalorder %s304, 1
                  %s309 = sphi %s258, %s258
                  %s310 = sphi %s254, %s254
                $region73: #{darknet_block.1} parent=62 // loop_header_branch
                  %307 = sbr.rel (%p305) target = $region77
                $region74: #{darknet_block.1} parent=62 // loop_body
                  %v311 = vld [vmem:[%s309] sm:%s302]
                  %312 = vst [vmem:[%s310] sm:%s302] %v311
                  %v313 = vld [vmem:[%s309 + $0x8] sm:%s302]
                  %314 = vst [vmem:[%s310 + $0x4] sm:%s302] %v313
                  %v315 = vld [vmem:[%s309 + $0x10] sm:%s302]
                  %316 = vst [vmem:[%s310 + $0x8] sm:%s302] %v315
                  %v317 = vld [vmem:[%s309 + $0x18] sm:%s302]
                  %318 = vst [vmem:[%s310 + $0xc] sm:%s302] %v317
                  %v319 = vld [vmem:[%s309 + $0x20] sm:%s302]
                  %320 = vst [vmem:[%s310 + $0x10] sm:%s302] %v319
                  %v321 = vld [vmem:[%s309 + $0x28] sm:%s302]
                  %322 = vst [vmem:[%s310 + $0x14] sm:%s302] %v321
                  %v323 = vld [vmem:[%s309 + $0x30] sm:%s302]
                  %324 = vst [vmem:[%s310 + $0x18] sm:%s302] %v323
                  %v325 = vld [vmem:[%s309 + $0x38] sm:%s302]
                  %326 = vst [vmem:[%s310 + $0x1c] sm:%s302] %v325
                $region75: #{darknet_block.1} parent=62 // loop_footer
                  %s308 = sadd.s32 1, %s304
                $region76: #{darknet_block.1} parent=62 // loop_footer_branch
                  %303 = sbr.rel target = $region72
                $region77: #{darknet_block.1} parent=62 // loop_exit
                  _
              $region63: #{darknet_block.1} parent=47 // pred_fallthru
                _
            $region48: #{darknet_block.1} parent=43 // pred_fallthru
              _
            // Predicated region
            $region49: #{darknet_block.1} parent=43 // pred_check
              _
            $region50: #{darknet_block.1} parent=43 // pred_check_branch
              %264 = sbr.rel (0) target = $region52
            $region51: #{darknet_block.1} parent=43 // pred_region
              %s266 = ssub.s32 16, 1
              loop: start=0, step=1, limit=1
              $region53: #{darknet_block.1} parent=51 // loop_pre_header
                _
              $region54: #{darknet_block.1} parent=51 // loop_header
                %s268 = sphi 0, %s272
                %p269 = scmp.ge.s32.totalorder %s268, 1
                %s273 = sphi %s258, %s258
                %s274 = sphi %s254, %s254
              $region55: #{darknet_block.1} parent=51 // loop_header_branch
                %271 = sbr.rel (%p269) target = $region59
              $region56: #{darknet_block.1} parent=51 // loop_body
                %v275 = vld [vmem:[%s273] sm:%s266]
                %276 = vst [vmem:[%s274] sm:%s266] %v275
                %v277 = vld [vmem:[%s273 + $0x8] sm:%s266]
                %278 = vst [vmem:[%s274 + $0x4] sm:%s266] %v277
                %v279 = vld [vmem:[%s273 + $0x10] sm:%s266]
                %280 = vst [vmem:[%s274 + $0x8] sm:%s266] %v279
                %v281 = vld [vmem:[%s273 + $0x18] sm:%s266]
                %282 = vst [vmem:[%s274 + $0xc] sm:%s266] %v281
                %v283 = vld [vmem:[%s273 + $0x20] sm:%s266]
                %284 = vst [vmem:[%s274 + $0x10] sm:%s266] %v283
                %v285 = vld [vmem:[%s273 + $0x28] sm:%s266]
                %286 = vst [vmem:[%s274 + $0x14] sm:%s266] %v285
                %v287 = vld [vmem:[%s273 + $0x30] sm:%s266]
                %288 = vst [vmem:[%s274 + $0x18] sm:%s266] %v287
                %v289 = vld [vmem:[%s273 + $0x38] sm:%s266]
                %290 = vst [vmem:[%s274 + $0x1c] sm:%s266] %v289
              $region57: #{darknet_block.1} parent=51 // loop_footer
                %s272 = sadd.s32 1, %s268
              $region58: #{darknet_block.1} parent=51 // loop_footer_branch
                %267 = sbr.rel target = $region54
              $region59: #{darknet_block.1} parent=51 // loop_exit
                _
            $region52: #{darknet_block.1} parent=43 // pred_fallthru
              _
          $region44: #{darknet_block.1} parent=39 // pred_fallthru
            _
          %327 = vnop
        $region40: #{darknet_block.1} parent=35 // pred_fallthru
          _
        // Predicated region
        $region78: #{darknet_block.1} parent=35 // pred_check
          %p328 = pneg %p75
        $region79: #{darknet_block.1} parent=35 // pred_check_branch
          %330 = sbr.rel (%p328) target = $region81
        $region80: #{darknet_block.1} parent=35 // pred_region
          %p331 = scmp.lt.s32.totalorder %s20, 1
          %s332 = scalar_select %p331, %s20, 1
          %p333 = scmp.lt.s32.totalorder %s21, 1
          %s334 = scalar_select %p333, %s21, 1
          %s335 = smul.addr %s334, 8
          %s336 = smul.addr %s332, 16
          %s337 = sadd.s32 %s335, %s336
          %s338 = smul.addr %s337, 4
          %s339 = scalar_lea.vmem %s1, %s338
        $region81: #{darknet_block.1} parent=35 // pred_fallthru
          _
      $region36: #{darknet_block.1} parent=5 // pred_fallthru
        _
      %p340 = scmp.le.s32.totalorder 1, %s13
      %p341 = scmp.lt.s32.totalorder %s13, 5
      %p342 = pnand %p340, %p341
      %p343 = pneg %p342
      // Predicated region
      $region82: #{darknet_block.1} parent=5 // pred_check
        _
      $region83: #{darknet_block.1} parent=5 // pred_check_branch
        %345 = sbr.rel (%p342) target = $region85
      $region84: #{darknet_block.1} parent=5 // pred_region
        %s346 = ssub.s32 %s13, 1
        %s347 = sand.u32 %s40, 1
        %s348 = sand.u32 %s40, 1
        %s349 = smul.addr %s348, 32
        %s350 = scalar_lea.vmem [#allocation2], %s349
        // Predicated region
        $region86: #{darknet_block.1} parent=84 // pred_check
          %p351 = pneg %p53
        $region87: #{darknet_block.1} parent=84 // pred_check_branch
          %353 = sbr.rel (%p351) target = $region89
        $region88: #{darknet_block.1} parent=84 // pred_region
          _
        $region89: #{darknet_block.1} parent=84 // pred_fallthru
          _
        %s354 = sand.u32 %s40, 1
        %s355 = sand.u32 %s40, 1
        %s356 = smul.addr %s355, 32
        %s357 = scalar_lea.vmem [#allocation2], %s356
        %p358 = pneg %p53
        %p359 = pneg %p50
        %p360 = scmp.lt.s32.totalorder %s22, 1
        %s361 = scalar_select %p360, %s22, 1
        %p362 = scmp.lt.s32.totalorder %s23, 1
        %s363 = scalar_select %p362, %s23, 1
        %s364 = smul.addr %s363, 8
        %s365 = smul.addr %s361, 16
        %s366 = sadd.s32 %s364, %s365
        %s367 = smul.addr %s366, 4
        %s368 = scalar_lea.vmem %s1, %s367
        %p369 = pneg %p81
        %p370 = pneg %p78
        %p371 = pneg %p102
        %p372 = pneg %p99
        %p373 = pneg %p123
        %p374 = pneg %p120
        %p375 = pneg %p144
        %p376 = pneg %p141
        %p377 = pneg %p165
        %p378 = pneg %p162
        %p379 = pneg %p186
        %p380 = pneg %p183
        %p381 = pneg %p214
        %p382 = pneg %p211
        %s383 = sand.u32 %s201, 1
        %s384 = sand.u32 %s201, 1
        %s385 = smul.addr %s384, 64
        %s386 = scalar_lea.vmem [#allocation3], %s385
        %p387 = scmp.lt.s32.totalorder %s22, 1
        %s388 = scalar_select %p387, %s22, 1
        %p389 = scmp.lt.s32.totalorder %s23, 1
        %s390 = scalar_select %p389, %s23, 1
        %s391 = smul.addr %s390, 8
        %s392 = smul.addr %s388, 16
        %s393 = sadd.s32 %s391, %s392
        %s394 = smul.addr %s393, 4
        %s395 = scalar_lea.vmem %s1, %s394
        %v399 = vld [vmem:[%s350] sm:$0xf]
        %v400 = vld [vmem:[%s350 + $0x4] sm:$0xf]
        %v401 = vld [vmem:[%s350 + $0x8] sm:$0xf]
        %v402 = vld [vmem:[%s350 + $0xc] sm:$0xf]
        %v403 = vld [vmem:[%s350 + $0x10] sm:$0xf]
        %v404 = vld [vmem:[%s350 + $0x14] sm:$0xf]
        %v405 = vld [vmem:[%s350 + $0x18] sm:$0xf]
        %v406 = vld [vmem:[%s350 + $0x1c] sm:$0xf]
        %v407 = vld [vmem:[%s395] sm:$0xf]
        %v408 = vld [vmem:[%s395 + $0x4] sm:$0xf]
        %v409 = vld [vmem:[%s395 + $0x8] sm:$0xf]
        %v410 = vld [vmem:[%s395 + $0xc] sm:$0xf]
        %v411 = vld [vmem:[%s395 + $0x10] sm:$0xf]
        %v412 = vld [vmem:[%s395 + $0x14] sm:$0xf]
        %v413 = vld [vmem:[%s395 + $0x18] sm:$0xf]
        %v414 = vld [vmem:[%s395 + $0x1c] sm:$0xf]
        %v423 = vunpack.c.l.b16 %v407
        %v424 = vunpack.c.l.b16 %v408
        %v425 = vunpack.c.l.b16 %v409
        %v426 = vunpack.c.l.b16 %v410
        %v427 = vunpack.c.l.b16 %v411
        %v428 = vunpack.c.l.b16 %v412
        %v429 = vunpack.c.l.b16 %v413
        %v430 = vunpack.c.l.b16 %v414
        %v431 = vpack.c.b16 %v424, %v423
        %v432 = vpack.c.b16 %v426, %v425
        %v433 = vpack.c.b16 %v428, %v427
        %v434 = vpack.c.b16 %v430, %v429
        %v443 = vunpack.c.l.b16 %v399
        %v444 = vunpack.c.l.b16 %v400
        %v445 = vunpack.c.l.b16 %v401
        %v446 = vunpack.c.l.b16 %v402
        %v447 = vunpack.c.l.b16 %v403
        %v448 = vunpack.c.l.b16 %v404
        %v449 = vunpack.c.l.b16 %v405
        %v450 = vunpack.c.l.b16 %v406
        %v451 = vpack.c.b16 %v444, %v443
        %v452 = vpack.c.b16 %v446, %v445
        %v453 = vpack.c.b16 %v448, %v447
        %v454 = vpack.c.b16 %v450, %v449
        %455 = vrot.lane.b32.xlu0 %v451, 17
        %v456 = vpop.permute.xlu0 %455
        %457 = vrot.lane.b32.xlu0 %v452, 17
        %v458 = vpop.permute.xlu0 %457
        %459 = vrot.lane.b32.xlu0 %v453, 17
        %v460 = vpop.permute.xlu0 %459
        %461 = vrot.lane.b32.xlu0 %v454, 17
        %v462 = vpop.permute.xlu0 %461
        %vm463 = vcmask 138240
        %v466 = vsel %vm463, %v431, %v456
        %v470 = vsel %vm463, %v432, %v458
        %v474 = vsel %vm463, %v433, %v460
        %v478 = vsel %vm463, %v434, %v462
        %v480 = vsel %vm463, %v456, %v431
        %v482 = vsel %vm463, %v458, %v432
        %v484 = vsel %vm463, %v460, %v433
        %v486 = vsel %vm463, %v462, %v434
        %v488 = vld [vmem:[%s2] sm:$0xf]
        %v489 = vld [vmem:[%s2 + $0x4] sm:$0xf]
        %v490 = vld [vmem:[%s2 + $0x8] sm:$0xf]
        %v491 = vld [vmem:[%s2 + $0xc] sm:$0xf]
        %v492 = vld [vmem:[%s4] sm:$0xff]
        %v493 = vld [vmem:[%s4 + $0x8] sm:$0xff]
        %v494 = vld [vmem:[%s4 + $0x10] sm:$0xff]
        %v495 = vld [vmem:[%s4 + $0x18] sm:$0xff]
        %497 = vset.pattern.permute.xlu0 0
        %498 = vperm.xlu0 %497, %v492
        %v499 = vpop.permute.xlu0 %498
        %502 = vset.pattern.permute.xlu0 0
        %503 = vperm.xlu0 %502, %v493
        %v504 = vpop.permute.xlu0 %503
        %507 = vset.pattern.permute.xlu0 0
        %508 = vperm.xlu0 %507, %v494
        %v509 = vpop.permute.xlu0 %508
        %512 = vset.pattern.permute.xlu0 0
        %513 = vperm.xlu0 %512, %v495
        %v514 = vpop.permute.xlu0 %513
        %v520 = vunpack.c.l.b16 %v488
        %v521 = vunpack.c.l.b16 %v489
        %v522 = vunpack.c.l.b16 %v490
        %v523 = vunpack.c.l.b16 %v491
        %v524 = vpack.c.b16 %v521, %v520
        %v525 = vpack.c.b16 %v523, %v522
        %vm526 = vcmask 523264
        %v528 = vsel %vm526, %v524, 0
        %v531 = vsel %vm526, %v525, 0
        %533 = vmatpush.bf16.msra.mxu0 0
        %534 = vmatpush.bf16.msra.mxu0 0
        %535 = vmatpush.bf16.msra.mxu0 0
        %536 = vmatpush.bf16.msra.mxu0 0
        %537 = vmatpush.bf16.msra.mxu0 %v478
        %538 = vmatpush.bf16.msra.mxu0 %v474
        %539 = vmatpush.bf16.msra.mxu0 %v470
        %540 = vmatpush.bf16.msra.mxu0 %v466
        %541 = vmatmul.bf16.gmra.mxu0 %v528
        %v542 = vpop.f32.mrf.mxu0
        %v543 = vadd.f32 %v499, %v542
        %v544 = vpop.f32.mrf.mxu0
        %v545 = vadd.f32 %v504, %v544
        %546 = vmatmul.bf16.gmra.mxu0 %v531
        %v547 = vpop.f32.mrf.mxu0
        %v548 = vadd.f32 %v509, %v547
        %v549 = vpop.f32.mrf.mxu0
        %v550 = vadd.f32 %v514, %v549
        %551 = vdwg.mxu0
        %552 = vmatpush.bf16.msra.mxu0 0
        %553 = vmatpush.bf16.msra.mxu0 0
        %554 = vmatpush.bf16.msra.mxu0 0
        %555 = vmatpush.bf16.msra.mxu0 0
        %556 = vmatpush.bf16.msra.mxu0 %v486
        %557 = vmatpush.bf16.msra.mxu0 %v484
        %558 = vmatpush.bf16.msra.mxu0 %v482
        %559 = vmatpush.bf16.msra.mxu0 %v480
        %560 = vmatmul.bf16.gmra.mxu0 %v528
        %v561 = vpop.f32.mrf.mxu0
        %v562 = vadd.f32 %v499, %v561
        %v563 = vpop.f32.mrf.mxu0
        %v564 = vadd.f32 %v504, %v563
        %565 = vmatmul.bf16.gmra.mxu0 %v531
        %v566 = vpop.f32.mrf.mxu0
        %v567 = vadd.f32 %v509, %v566
        %v568 = vpop.f32.mrf.mxu0
        %v569 = vadd.f32 %v514, %v568
        %570 = vdwg.mxu0
        %v571 = vmul.f32 %v543, 0.1
        %v572 = vmul.f32 %v562, 0.1
        %v573 = vmul.f32 %v545, 0.1
        %v574 = vmul.f32 %v564, 0.1
        %v575 = vmul.f32 %v548, 0.1
        %v576 = vmul.f32 %v567, 0.1
        %v577 = vmul.f32 %v550, 0.1
        %v578 = vmul.f32 %v569, 0.1
        %v579 = vmax.f32 %v543, %v571
        %v580 = vmax.f32 %v562, %v572
        %v581 = vmax.f32 %v545, %v573
        %v582 = vmax.f32 %v564, %v574
        %v583 = vmax.f32 %v548, %v575
        %v584 = vmax.f32 %v567, %v576
        %v585 = vmax.f32 %v550, %v577
        %v586 = vmax.f32 %v569, %v578
        %v587 = vpack.c.bf16 %v580, %v579
        %v588 = vpack.c.bf16 %v582, %v581
        %v589 = vpack.c.bf16 %v584, %v583
        %v590 = vpack.c.bf16 %v586, %v585
        %v591 = vld [vmem:[%s6] sm:$0x3]
        %s592 = smul.u32 %s23, 8
        %v593 = vstv %s592
        %v594 = vadd.s32 %v591, %v593
        %vm595 = vcmp.ge.s32.totalorder %v594, 1
        %vm596 = vcmp.le.s32.totalorder %v594, 14
        %vm597 = vcmp.ge.s32.totalorder %v591, 1
        %vm598 = vcmp.le.s32.totalorder %v591, 14
        %v599 = vsel %vm597, 1, 0
        %v600 = vrot.slane %v599, 1
        %vm601 = vcmp.ne.s32.totalorder %v600, 0
        %vm602 = vmand %vm595, %vm601
        %v603 = vsel %vm602, 1, 0
        %v604 = vperm.slane %v603, 0
        %vm605 = vcmp.eq.s32.totalorder %v604, 1
        %vm606 = vmpackc.low %vm605, %vm605
        %v607 = vsel %vm606, %v587, 0
        %v608 = vsel %vm606, %v588, 0
        %v609 = vsel %vm606, %v589, 0
        %v610 = vsel %vm606, %v590, 0
        %v611 = vld [vmem:[%s3] sm:$0xf]
        %v612 = vld [vmem:[%s3 + $0x4] sm:$0xf]
        %v613 = vld [vmem:[%s3 + $0x8] sm:$0xf]
        %v614 = vld [vmem:[%s3 + $0xc] sm:$0xf]
        %v615 = vld [vmem:[%s3 + $0x10] sm:$0xf]
        %v616 = vld [vmem:[%s3 + $0x14] sm:$0xf]
        %v617 = vld [vmem:[%s3 + $0x18] sm:$0xf]
        %v618 = vld [vmem:[%s3 + $0x1c] sm:$0xf]
        %v619 = vsel %vm595, 1, 0
        %v620 = vperm.slane %v619, 0
        %vm621 = vcmp.eq.s32.totalorder %v620, 1
        %vm622 = vmpackc.low %vm621, %vm621
        %v623 = vsel %vm622, 65537, 0
        %624 = vrot.lane.b32.xlu0 %v623, 1
        %v625 = vpop.permute.xlu0 %624
        %v626 = vrot.slane %v625, 4
        %vm627 = vcmask 7168
        %v628 = vsel %vm627, %v626, %v625
        %v629 = vunpack.c.l.b16 %v628
        %v630 = vunpack.c.h.b16 %v628
        %v631 = vunpack.c.l.b16 0
        %v632 = vunpack.c.h.b16 0
        %vm633 = vcmp.ne.s32.totalorder %v629, %v631
        %vm634 = vcmp.ne.s32.totalorder %v630, %v632
        %vm635 = vmpackc.low %vm634, %vm633
        %v636 = vsel %vm635, %v587, 0
        %v637 = vsel %vm635, %v588, 0
        %v638 = vsel %vm635, %v589, 0
        %v639 = vsel %vm635, %v590, 0
        %s640 = scalar_lea.vmem %s3, 32
        %v641 = vld [vmem:[%s640] sm:$0xf]
        %v642 = vld [vmem:[%s640 + $0x4] sm:$0xf]
        %v643 = vld [vmem:[%s640 + $0x8] sm:$0xf]
        %v644 = vld [vmem:[%s640 + $0xc] sm:$0xf]
        %v645 = vld [vmem:[%s640 + $0x10] sm:$0xf]
        %v646 = vld [vmem:[%s640 + $0x14] sm:$0xf]
        %v647 = vld [vmem:[%s640 + $0x18] sm:$0xf]
        %v648 = vld [vmem:[%s640 + $0x1c] sm:$0xf]
        %v657 = vunpack.c.l.b16 %v641
        %v658 = vunpack.c.l.b16 %v642
        %v659 = vunpack.c.l.b16 %v643
        %v660 = vunpack.c.l.b16 %v644
        %v661 = vunpack.c.l.b16 %v645
        %v662 = vunpack.c.l.b16 %v646
        %v663 = vunpack.c.l.b16 %v647
        %v664 = vunpack.c.l.b16 %v648
        %v665 = vpack.c.b16 %v658, %v657
        %v666 = vpack.c.b16 %v660, %v659
        %v667 = vpack.c.b16 %v662, %v661
        %v668 = vpack.c.b16 %v664, %v663
        %v673 = vunpack.c.l.b16 %v636
        %v674 = vunpack.c.h.b16 %v636
        %v675 = vunpack.c.l.b16 %v637
        %v676 = vunpack.c.h.b16 %v637
        %v677 = vunpack.c.l.b16 %v638
        %v678 = vunpack.c.h.b16 %v638
        %v679 = vunpack.c.l.b16 %v639
        %v680 = vunpack.c.h.b16 %v639
        %v681 = vpack.c.b16 %v675, %v673
        %v682 = vpack.c.b16 %v676, %v674
        %v683 = vpack.c.b16 %v679, %v677
        %v684 = vpack.c.b16 %v680, %v678
        %685 = vrot.lane.b32.xlu0 %v681, 127
        %v686 = vpop.permute.xlu0 %685
        %687 = vrot.lane.b32.xlu0 %v682, 127
        %v688 = vpop.permute.xlu0 %687
        %689 = vrot.lane.b32.xlu0 %v683, 127
        %v690 = vpop.permute.xlu0 %689
        %691 = vrot.lane.b32.xlu0 %v684, 127
        %v692 = vpop.permute.xlu0 %691
        %vm693 = vcmask 1039360
        %v694 = vsel %vm693, %v686, %v688
        %v695 = vsel %vm693, %v690, %v692
        %vm698 = vcmask 261120
        %v700 = vsel %vm698, %v665, 0
        %v703 = vsel %vm698, %v666, 0
        %v706 = vsel %vm698, %v667, 0
        %v709 = vsel %vm698, %v668, 0
        %711 = vmatpush.bf16.msra.mxu0 0
        %712 = vmatpush.bf16.msra.mxu0 0
        %713 = vmatpush.bf16.msra.mxu0 0
        %714 = vmatpush.bf16.msra.mxu0 0
        %715 = vmatpush.bf16.msra.mxu0 0
        %716 = vmatpush.bf16.msra.mxu0 0
        %717 = vmatpush.bf16.msra.mxu0 %v695
        %718 = vmatpush.bf16.msra.mxu0 %v694
        %719 = vmatmul.bf16.gmra.mxu0 %v700
        %v720 = vpop.f32.mrf.mxu0
        %v721 = vadd.f32 0.0, %v720
        %v722 = vpop.f32.mrf.mxu0
        %v723 = vadd.f32 0.0, %v722
        %724 = vmatmul.bf16.gmra.mxu0 %v703
        %v725 = vpop.f32.mrf.mxu0
        %v726 = vadd.f32 0.0, %v725
        %v727 = vpop.f32.mrf.mxu0
        %v728 = vadd.f32 0.0, %v727
        %729 = vmatmul.bf16.gmra.mxu0 %v706
        %v730 = vpop.f32.mrf.mxu0
        %v731 = vadd.f32 0.0, %v730
        %v732 = vpop.f32.mrf.mxu0
        %v733 = vadd.f32 0.0, %v732
        %734 = vmatmul.bf16.gmra.mxu0 %v709
        %v735 = vpop.f32.mrf.mxu0
        %v736 = vadd.f32 0.0, %v735
        %v737 = vpop.f32.mrf.mxu0
        %v738 = vadd.f32 0.0, %v737
        %739 = vdwg.mxu0
        %v748 = vunpack.c.l.b16 %v611
        %v749 = vunpack.c.l.b16 %v612
        %v750 = vunpack.c.l.b16 %v613
        %v751 = vunpack.c.l.b16 %v614
        %v752 = vunpack.c.l.b16 %v615
        %v753 = vunpack.c.l.b16 %v616
        %v754 = vunpack.c.l.b16 %v617
        %v755 = vunpack.c.l.b16 %v618
        %v756 = vpack.c.b16 %v749, %v748
        %v757 = vpack.c.b16 %v751, %v750
        %v758 = vpack.c.b16 %v753, %v752
        %v759 = vpack.c.b16 %v755, %v754
        %v764 = vunpack.c.l.b16 %v607
        %v765 = vunpack.c.l.b16 %v608
        %v766 = vunpack.c.l.b16 %v609
        %v767 = vunpack.c.l.b16 %v610
        %v768 = vpack.c.b16 %v765, %v764
        %v769 = vpack.c.b16 %v767, %v766
        %v773 = vsel %vm698, %v756, 0
        %v776 = vsel %vm698, %v757, 0
        %v779 = vsel %vm698, %v758, 0
        %v782 = vsel %vm698, %v759, 0
        %784 = vmatpush.bf16.msra.mxu0 0
        %785 = vmatpush.bf16.msra.mxu0 0
        %786 = vmatpush.bf16.msra.mxu0 0
        %787 = vmatpush.bf16.msra.mxu0 0
        %788 = vmatpush.bf16.msra.mxu0 0
        %789 = vmatpush.bf16.msra.mxu0 0
        %790 = vmatpush.bf16.msra.mxu0 %v769
        %791 = vmatpush.bf16.msra.mxu0 %v768
        %792 = vmatmul.bf16.gmra.mxu0 %v773
        %v793 = vpop.f32.mrf.mxu0
        %v794 = vadd.f32 %v721, %v793
        %v795 = vpop.f32.mrf.mxu0
        %v796 = vadd.f32 %v723, %v795
        %797 = vmatmul.bf16.gmra.mxu0 %v776
        %v798 = vpop.f32.mrf.mxu0
        %v799 = vadd.f32 %v726, %v798
        %v800 = vpop.f32.mrf.mxu0
        %v801 = vadd.f32 %v728, %v800
        %802 = vmatmul.bf16.gmra.mxu0 %v779
        %v803 = vpop.f32.mrf.mxu0
        %v804 = vadd.f32 %v731, %v803
        %v805 = vpop.f32.mrf.mxu0
        %v806 = vadd.f32 %v733, %v805
        %807 = vmatmul.bf16.gmra.mxu0 %v782
        %v808 = vpop.f32.mrf.mxu0
        %v809 = vadd.f32 %v736, %v808
        %v810 = vpop.f32.mrf.mxu0
        %v811 = vadd.f32 %v738, %v810
        %812 = vdwg.mxu0
        %v813 = vsel %vm598, 1, 0
        %v814 = vrot.slane %v813, 1
        %vm815 = vcmp.ne.s32.totalorder %v814, 0
        %vm816 = vmand %vm595, %vm815
        %v817 = vsel %vm816, 1, 0
        %v818 = vperm.slane %v817, 0
        %vm819 = vcmp.eq.s32.totalorder %v818, 1
        %vm820 = vmpackc.low %vm819, %vm819
        %v821 = vsel %vm820, 65537, 0
        %822 = vrot.lane.b32.xlu0 %v821, 2
        %v823 = vpop.permute.xlu0 %822
        %v824 = vrot.slane %v823, 4
        %vm825 = vcmask 15360
        %v826 = vsel %vm825, %v824, %v823
        %v827 = vunpack.c.l.b16 %v826
        %v828 = vunpack.c.h.b16 %v826
        %v829 = vunpack.c.l.b16 0
        %v830 = vunpack.c.h.b16 0
        %vm831 = vcmp.ne.s32.totalorder %v827, %v829
        %vm832 = vcmp.ne.s32.totalorder %v828, %v830
        %vm833 = vmpackc.low %vm832, %vm831
        %v834 = vsel %vm833, %v587, 0
        %v835 = vsel %vm833, %v588, 0
        %v836 = vsel %vm833, %v589, 0
        %v837 = vsel %vm833, %v590, 0
        %s838 = scalar_lea.vmem %s3, 64
        %v839 = vld [vmem:[%s838] sm:$0xf]
        %v840 = vld [vmem:[%s838 + $0x4] sm:$0xf]
        %v841 = vld [vmem:[%s838 + $0x8] sm:$0xf]
        %v842 = vld [vmem:[%s838 + $0xc] sm:$0xf]
        %v843 = vld [vmem:[%s838 + $0x10] sm:$0xf]
        %v844 = vld [vmem:[%s838 + $0x14] sm:$0xf]
        %v845 = vld [vmem:[%s838 + $0x18] sm:$0xf]
        %v846 = vld [vmem:[%s838 + $0x1c] sm:$0xf]
        %v855 = vunpack.c.l.b16 %v839
        %v856 = vunpack.c.l.b16 %v840
        %v857 = vunpack.c.l.b16 %v841
        %v858 = vunpack.c.l.b16 %v842
        %v859 = vunpack.c.l.b16 %v843
        %v860 = vunpack.c.l.b16 %v844
        %v861 = vunpack.c.l.b16 %v845
        %v862 = vunpack.c.l.b16 %v846
        %v863 = vpack.c.b16 %v856, %v855
        %v864 = vpack.c.b16 %v858, %v857
        %v865 = vpack.c.b16 %v860, %v859
        %v866 = vpack.c.b16 %v862, %v861
        %v871 = vunpack.c.l.b16 %v834
        %v872 = vunpack.c.h.b16 %v834
        %v873 = vunpack.c.l.b16 %v835
        %v874 = vunpack.c.h.b16 %v835
        %v875 = vunpack.c.l.b16 %v836
        %v876 = vunpack.c.h.b16 %v836
        %v877 = vunpack.c.l.b16 %v837
        %v878 = vunpack.c.h.b16 %v837
        %v879 = vpack.c.b16 %v873, %v871
        %v880 = vpack.c.b16 %v874, %v872
        %v881 = vpack.c.b16 %v877, %v875
        %v882 = vpack.c.b16 %v878, %v876
        %883 = vrot.lane.b32.xlu0 %v879, 126
        %v884 = vpop.permute.xlu0 %883
        %885 = vrot.lane.b32.xlu0 %v880, 126
        %v886 = vpop.permute.xlu0 %885
        %887 = vrot.lane.b32.xlu0 %v881, 126
        %v888 = vpop.permute.xlu0 %887
        %889 = vrot.lane.b32.xlu0 %v882, 126
        %v890 = vpop.permute.xlu0 %889
        %vm891 = vcmask 1031168
        %v892 = vsel %vm891, %v884, %v886
        %v893 = vsel %vm891, %v888, %v890
        %v897 = vsel %vm698, %v863, 0
        %v900 = vsel %vm698, %v864, 0
        %v903 = vsel %vm698, %v865, 0
        %v906 = vsel %vm698, %v866, 0
        %908 = vmatpush.bf16.msra.mxu0 0
        %909 = vmatpush.bf16.msra.mxu0 0
        %910 = vmatpush.bf16.msra.mxu0 0
        %911 = vmatpush.bf16.msra.mxu0 0
        %912 = vmatpush.bf16.msra.mxu0 0
        %913 = vmatpush.bf16.msra.mxu0 0
        %914 = vmatpush.bf16.msra.mxu0 %v893
        %915 = vmatpush.bf16.msra.mxu0 %v892
        %916 = vmatmul.bf16.gmra.mxu0 %v897
        %v917 = vpop.f32.mrf.mxu0
        %v918 = vadd.f32 0.0, %v917
        %v919 = vpop.f32.mrf.mxu0
        %v920 = vadd.f32 0.0, %v919
        %921 = vmatmul.bf16.gmra.mxu0 %v900
        %v922 = vpop.f32.mrf.mxu0
        %v923 = vadd.f32 0.0, %v922
        %v924 = vpop.f32.mrf.mxu0
        %v925 = vadd.f32 0.0, %v924
        %926 = vmatmul.bf16.gmra.mxu0 %v903
        %v927 = vpop.f32.mrf.mxu0
        %v928 = vadd.f32 0.0, %v927
        %v929 = vpop.f32.mrf.mxu0
        %v930 = vadd.f32 0.0, %v929
        %931 = vmatmul.bf16.gmra.mxu0 %v906
        %v932 = vpop.f32.mrf.mxu0
        %v933 = vadd.f32 0.0, %v932
        %v934 = vpop.f32.mrf.mxu0
        %v935 = vadd.f32 0.0, %v934
        %936 = vdwg.mxu0
        %v937 = vadd.f32 %v794, %v918
        %v938 = vadd.f32 %v796, %v920
        %v939 = vadd.f32 %v799, %v923
        %v940 = vadd.f32 %v801, %v925
        %v941 = vadd.f32 %v804, %v928
        %v942 = vadd.f32 %v806, %v930
        %v943 = vadd.f32 %v809, %v933
        %v944 = vadd.f32 %v811, %v935
        %v945 = vperm.slane %v599, 1
        %vm946 = vcmp.eq.s32.totalorder %v945, 1
        %vm947 = vmpackc.low %vm946, %vm946
        %v948 = vsel %vm947, 65537, 0
        %949 = vrot.lane.b32.xlu0 %v948, 16
        %v950 = vpop.permute.xlu0 %949
        %v951 = vrot.slane %v950, 4
        %vm952 = vcmask 130048
        %v953 = vsel %vm952, %v951, %v950
        %v954 = vunpack.c.l.b16 %v953
        %v955 = vunpack.c.h.b16 %v953
        %v956 = vunpack.c.l.b16 0
        %v957 = vunpack.c.h.b16 0
        %vm958 = vcmp.ne.s32.totalorder %v954, %v956
        %vm959 = vcmp.ne.s32.totalorder %v955, %v957
        %vm960 = vmpackc.low %vm959, %vm958
        %v961 = vsel %vm960, %v587, 0
        %v962 = vsel %vm960, %v588, 0
        %v963 = vsel %vm960, %v589, 0
        %v964 = vsel %vm960, %v590, 0
        %s965 = scalar_lea.vmem %s3, 96
        %v966 = vld [vmem:[%s965] sm:$0xf]
        %v967 = vld [vmem:[%s965 + $0x4] sm:$0xf]
        %v968 = vld [vmem:[%s965 + $0x8] sm:$0xf]
        %v969 = vld [vmem:[%s965 + $0xc] sm:$0xf]
        %v970 = vld [vmem:[%s965 + $0x10] sm:$0xf]
        %v971 = vld [vmem:[%s965 + $0x14] sm:$0xf]
        %v972 = vld [vmem:[%s965 + $0x18] sm:$0xf]
        %v973 = vld [vmem:[%s965 + $0x1c] sm:$0xf]
        %v982 = vunpack.c.l.b16 %v966
        %v983 = vunpack.c.l.b16 %v967
        %v984 = vunpack.c.l.b16 %v968
        %v985 = vunpack.c.l.b16 %v969
        %v986 = vunpack.c.l.b16 %v970
        %v987 = vunpack.c.l.b16 %v971
        %v988 = vunpack.c.l.b16 %v972
        %v989 = vunpack.c.l.b16 %v973
        %v990 = vpack.c.b16 %v983, %v982
        %v991 = vpack.c.b16 %v985, %v984
        %v992 = vpack.c.b16 %v987, %v986
        %v993 = vpack.c.b16 %v989, %v988
        %v998 = vunpack.c.l.b16 %v961
        %v999 = vunpack.c.h.b16 %v961
        %v1000 = vunpack.c.l.b16 %v962
        %v1001 = vunpack.c.h.b16 %v962
        %v1002 = vunpack.c.l.b16 %v963
        %v1003 = vunpack.c.h.b16 %v963
        %v1004 = vunpack.c.l.b16 %v964
        %v1005 = vunpack.c.h.b16 %v964
        %v1006 = vpack.c.b16 %v1000, %v998
        %v1007 = vpack.c.b16 %v1001, %v999
        %v1008 = vpack.c.b16 %v1004, %v1002
        %v1009 = vpack.c.b16 %v1005, %v1003
        %1010 = vrot.lane.b32.xlu0 %v1006, 112
        %v1011 = vpop.permute.xlu0 %1010
        %1012 = vrot.lane.b32.xlu0 %v1007, 112
        %v1013 = vpop.permute.xlu0 %1012
        %1014 = vrot.lane.b32.xlu0 %v1008, 112
        %v1015 = vpop.permute.xlu0 %1014
        %1016 = vrot.lane.b32.xlu0 %v1009, 112
        %v1017 = vpop.permute.xlu0 %1016
        %vm1018 = vcmask 916480
        %v1019 = vsel %vm1018, %v1011, %v1013
        %v1020 = vsel %vm1018, %v1015, %v1017
        %v1024 = vsel %vm698, %v990, 0
        %v1027 = vsel %vm698, %v991, 0
        %v1030 = vsel %vm698, %v992, 0
        %v1033 = vsel %vm698, %v993, 0
        %1035 = vmatpush.bf16.msra.mxu0 0
        %1036 = vmatpush.bf16.msra.mxu0 0
        %1037 = vmatpush.bf16.msra.mxu0 0
        %1038 = vmatpush.bf16.msra.mxu0 0
        %1039 = vmatpush.bf16.msra.mxu0 0
        %1040 = vmatpush.bf16.msra.mxu0 0
        %1041 = vmatpush.bf16.msra.mxu0 %v1020
        %1042 = vmatpush.bf16.msra.mxu0 %v1019
        %1043 = vmatmul.bf16.gmra.mxu0 %v1024
        %v1044 = vpop.f32.mrf.mxu0
        %v1045 = vadd.f32 0.0, %v1044
        %v1046 = vpop.f32.mrf.mxu0
        %v1047 = vadd.f32 0.0, %v1046
        %1048 = vmatmul.bf16.gmra.mxu0 %v1027
        %v1049 = vpop.f32.mrf.mxu0
        %v1050 = vadd.f32 0.0, %v1049
        %v1051 = vpop.f32.mrf.mxu0
        %v1052 = vadd.f32 0.0, %v1051
        %1053 = vmatmul.bf16.gmra.mxu0 %v1030
        %v1054 = vpop.f32.mrf.mxu0
        %v1055 = vadd.f32 0.0, %v1054
        %v1056 = vpop.f32.mrf.mxu0
        %v1057 = vadd.f32 0.0, %v1056
        %1058 = vmatmul.bf16.gmra.mxu0 %v1033
        %v1059 = vpop.f32.mrf.mxu0
        %v1060 = vadd.f32 0.0, %v1059
        %v1061 = vpop.f32.mrf.mxu0
        %v1062 = vadd.f32 0.0, %v1061
        %1063 = vdwg.mxu0
        %v1064 = vadd.f32 %v937, %v1045
        %v1065 = vadd.f32 %v938, %v1047
        %v1066 = vadd.f32 %v939, %v1050
        %v1067 = vadd.f32 %v940, %v1052
        %v1068 = vadd.f32 %v941, %v1055
        %v1069 = vadd.f32 %v942, %v1057
        %v1070 = vadd.f32 %v943, %v1060
        %v1071 = vadd.f32 %v944, %v1062
        %s1072 = scalar_lea.vmem %s3, 128
        %v1073 = vld [vmem:[%s1072] sm:$0xf]
        %v1074 = vld [vmem:[%s1072 + $0x4] sm:$0xf]
        %v1075 = vld [vmem:[%s1072 + $0x8] sm:$0xf]
        %v1076 = vld [vmem:[%s1072 + $0xc] sm:$0xf]
        %v1077 = vld [vmem:[%s1072 + $0x10] sm:$0xf]
        %v1078 = vld [vmem:[%s1072 + $0x14] sm:$0xf]
        %v1079 = vld [vmem:[%s1072 + $0x18] sm:$0xf]
        %v1080 = vld [vmem:[%s1072 + $0x1c] sm:$0xf]
        %v1089 = vunpack.c.l.b16 %v1073
        %v1090 = vunpack.c.l.b16 %v1074
        %v1091 = vunpack.c.l.b16 %v1075
        %v1092 = vunpack.c.l.b16 %v1076
        %v1093 = vunpack.c.l.b16 %v1077
        %v1094 = vunpack.c.l.b16 %v1078
        %v1095 = vunpack.c.l.b16 %v1079
        %v1096 = vunpack.c.l.b16 %v1080
        %v1097 = vpack.c.b16 %v1090, %v1089
        %v1098 = vpack.c.b16 %v1092, %v1091
        %v1099 = vpack.c.b16 %v1094, %v1093
        %v1100 = vpack.c.b16 %v1096, %v1095
        %v1105 = vunpack.c.l.b16 %v587
        %v1106 = vunpack.c.h.b16 %v587
        %v1107 = vunpack.c.l.b16 %v588
        %v1108 = vunpack.c.h.b16 %v588
        %v1109 = vunpack.c.l.b16 %v589
        %v1110 = vunpack.c.h.b16 %v589
        %v1111 = vunpack.c.l.b16 %v590
        %v1112 = vunpack.c.h.b16 %v590
        %v1113 = vpack.c.b16 %v1107, %v1105
        %v1114 = vpack.c.b16 %v1108, %v1106
        %v1115 = vpack.c.b16 %v1111, %v1109
        %v1116 = vpack.c.b16 %v1112, %v1110
        %1117 = vrot.lane.b32.xlu0 %v1113, 111
        %v1118 = vpop.permute.xlu0 %1117
        %1119 = vrot.lane.b32.xlu0 %v1114, 111
        %v1120 = vpop.permute.xlu0 %1119
        %1121 = vrot.lane.b32.xlu0 %v1115, 111
        %v1122 = vpop.permute.xlu0 %1121
        %1123 = vrot.lane.b32.xlu0 %v1116, 111
        %v1124 = vpop.permute.xlu0 %1123
        %vm1125 = vcmask 908288
        %v1126 = vsel %vm1125, %v1118, %v1120
        %v1127 = vsel %vm1125, %v1122, %v1124
        %v1131 = vsel %vm698, %v1097, 0
        %v1134 = vsel %vm698, %v1098, 0
        %v1137 = vsel %vm698, %v1099, 0
        %v1140 = vsel %vm698, %v1100, 0
        %1142 = vmatpush.bf16.msra.mxu0 0
        %1143 = vmatpush.bf16.msra.mxu0 0
        %1144 = vmatpush.bf16.msra.mxu0 0
        %1145 = vmatpush.bf16.msra.mxu0 0
        %1146 = vmatpush.bf16.msra.mxu0 0
        %1147 = vmatpush.bf16.msra.mxu0 0
        %1148 = vmatpush.bf16.msra.mxu0 %v1127
        %1149 = vmatpush.bf16.msra.mxu0 %v1126
        %1150 = vmatmul.bf16.gmra.mxu0 %v1131
        %v1151 = vpop.f32.mrf.mxu0
        %v1152 = vadd.f32 0.0, %v1151
        %v1153 = vpop.f32.mrf.mxu0
        %v1154 = vadd.f32 0.0, %v1153
        %1155 = vmatmul.bf16.gmra.mxu0 %v1134
        %v1156 = vpop.f32.mrf.mxu0
        %v1157 = vadd.f32 0.0, %v1156
        %v1158 = vpop.f32.mrf.mxu0
        %v1159 = vadd.f32 0.0, %v1158
        %1160 = vmatmul.bf16.gmra.mxu0 %v1137
        %v1161 = vpop.f32.mrf.mxu0
        %v1162 = vadd.f32 0.0, %v1161
        %v1163 = vpop.f32.mrf.mxu0
        %v1164 = vadd.f32 0.0, %v1163
        %1165 = vmatmul.bf16.gmra.mxu0 %v1140
        %v1166 = vpop.f32.mrf.mxu0
        %v1167 = vadd.f32 0.0, %v1166
        %v1168 = vpop.f32.mrf.mxu0
        %v1169 = vadd.f32 0.0, %v1168
        %1170 = vdwg.mxu0
        %v1171 = vadd.f32 %v1064, %v1152
        %v1172 = vadd.f32 %v1065, %v1154
        %v1173 = vadd.f32 %v1066, %v1157
        %v1174 = vadd.f32 %v1067, %v1159
        %v1175 = vadd.f32 %v1068, %v1162
        %v1176 = vadd.f32 %v1069, %v1164
        %v1177 = vadd.f32 %v1070, %v1167
        %v1178 = vadd.f32 %v1071, %v1169
        %v1179 = vperm.slane %v813, 1
        %vm1180 = vcmp.eq.s32.totalorder %v1179, 1
        %vm1181 = vmpackc.low %vm1180, %vm1180
        %v1182 = vsel %vm1181, 65537, 0
        %1183 = vrot.lane.b32.xlu0 %v1182, 18
        %v1184 = vpop.permute.xlu0 %1183
        %v1185 = vrot.slane %v1184, 4
        %vm1186 = vcmask 146432
        %v1187 = vsel %vm1186, %v1185, %v1184
        %v1188 = vunpack.c.l.b16 %v1187
        %v1189 = vunpack.c.h.b16 %v1187
        %v1190 = vunpack.c.l.b16 0
        %v1191 = vunpack.c.h.b16 0
        %vm1192 = vcmp.ne.s32.totalorder %v1188, %v1190
        %vm1193 = vcmp.ne.s32.totalorder %v1189, %v1191
        %vm1194 = vmpackc.low %vm1193, %vm1192
        %v1195 = vsel %vm1194, %v587, 0
        %v1196 = vsel %vm1194, %v588, 0
        %v1197 = vsel %vm1194, %v589, 0
        %v1198 = vsel %vm1194, %v590, 0
        %s1199 = scalar_lea.vmem %s3, 160
        %v1200 = vld [vmem:[%s1199] sm:$0xf]
        %v1201 = vld [vmem:[%s1199 + $0x4] sm:$0xf]
        %v1202 = vld [vmem:[%s1199 + $0x8] sm:$0xf]
        %v1203 = vld [vmem:[%s1199 + $0xc] sm:$0xf]
        %v1204 = vld [vmem:[%s1199 + $0x10] sm:$0xf]
        %v1205 = vld [vmem:[%s1199 + $0x14] sm:$0xf]
        %v1206 = vld [vmem:[%s1199 + $0x18] sm:$0xf]
        %v1207 = vld [vmem:[%s1199 + $0x1c] sm:$0xf]
        %v1216 = vunpack.c.l.b16 %v1200
        %v1217 = vunpack.c.l.b16 %v1201
        %v1218 = vunpack.c.l.b16 %v1202
        %v1219 = vunpack.c.l.b16 %v1203
        %v1220 = vunpack.c.l.b16 %v1204
        %v1221 = vunpack.c.l.b16 %v1205
        %v1222 = vunpack.c.l.b16 %v1206
        %v1223 = vunpack.c.l.b16 %v1207
        %v1224 = vpack.c.b16 %v1217, %v1216
        %v1225 = vpack.c.b16 %v1219, %v1218
        %v1226 = vpack.c.b16 %v1221, %v1220
        %v1227 = vpack.c.b16 %v1223, %v1222
        %v1232 = vunpack.c.l.b16 %v1195
        %v1233 = vunpack.c.h.b16 %v1195
        %v1234 = vunpack.c.l.b16 %v1196
        %v1235 = vunpack.c.h.b16 %v1196
        %v1236 = vunpack.c.l.b16 %v1197
        %v1237 = vunpack.c.h.b16 %v1197
        %v1238 = vunpack.c.l.b16 %v1198
        %v1239 = vunpack.c.h.b16 %v1198
        %v1240 = vpack.c.b16 %v1234, %v1232
        %v1241 = vpack.c.b16 %v1235, %v1233
        %v1242 = vpack.c.b16 %v1238, %v1236
        %v1243 = vpack.c.b16 %v1239, %v1237
        %1244 = vrot.lane.b32.xlu0 %v1240, 110
        %v1245 = vpop.permute.xlu0 %1244
        %1246 = vrot.lane.b32.xlu0 %v1241, 110
        %v1247 = vpop.permute.xlu0 %1246
        %1248 = vrot.lane.b32.xlu0 %v1242, 110
        %v1249 = vpop.permute.xlu0 %1248
        %1250 = vrot.lane.b32.xlu0 %v1243, 110
        %v1251 = vpop.permute.xlu0 %1250
        %vm1252 = vcmask 900096
        %v1253 = vsel %vm1252, %v1245, %v1247
        %v1254 = vsel %vm1252, %v1249, %v1251
        %v1258 = vsel %vm698, %v1224, 0
        %v1261 = vsel %vm698, %v1225, 0
        %v1264 = vsel %vm698, %v1226, 0
        %v1267 = vsel %vm698, %v1227, 0
        %1269 = vmatpush.bf16.msra.mxu0 0
        %1270 = vmatpush.bf16.msra.mxu0 0
        %1271 = vmatpush.bf16.msra.mxu0 0
        %1272 = vmatpush.bf16.msra.mxu0 0
        %1273 = vmatpush.bf16.msra.mxu0 0
        %1274 = vmatpush.bf16.msra.mxu0 0
        %1275 = vmatpush.bf16.msra.mxu0 %v1254
        %1276 = vmatpush.bf16.msra.mxu0 %v1253
        %1277 = vmatmul.bf16.gmra.mxu0 %v1258
        %v1278 = vpop.f32.mrf.mxu0
        %v1279 = vadd.f32 0.0, %v1278
        %v1280 = vpop.f32.mrf.mxu0
        %v1281 = vadd.f32 0.0, %v1280
        %1282 = vmatmul.bf16.gmra.mxu0 %v1261
        %v1283 = vpop.f32.mrf.mxu0
        %v1284 = vadd.f32 0.0, %v1283
        %v1285 = vpop.f32.mrf.mxu0
        %v1286 = vadd.f32 0.0, %v1285
        %1287 = vmatmul.bf16.gmra.mxu0 %v1264
        %v1288 = vpop.f32.mrf.mxu0
        %v1289 = vadd.f32 0.0, %v1288
        %v1290 = vpop.f32.mrf.mxu0
        %v1291 = vadd.f32 0.0, %v1290
        %1292 = vmatmul.bf16.gmra.mxu0 %v1267
        %v1293 = vpop.f32.mrf.mxu0
        %v1294 = vadd.f32 0.0, %v1293
        %v1295 = vpop.f32.mrf.mxu0
        %v1296 = vadd.f32 0.0, %v1295
        %1297 = vdwg.mxu0
        %v1298 = vadd.f32 %v1171, %v1279
        %v1299 = vadd.f32 %v1172, %v1281
        %v1300 = vadd.f32 %v1173, %v1284
        %v1301 = vadd.f32 %v1174, %v1286
        %v1302 = vadd.f32 %v1175, %v1289
        %v1303 = vadd.f32 %v1176, %v1291
        %v1304 = vadd.f32 %v1177, %v1294
        %v1305 = vadd.f32 %v1178, %v1296
        %vm1306 = vmand %vm596, %vm601
        %v1307 = vsel %vm1306, 1, 0
        %v1308 = vperm.slane %v1307, 0
        %vm1309 = vcmp.eq.s32.totalorder %v1308, 1
        %vm1310 = vmpackc.low %vm1309, %vm1309
        %v1311 = vsel %vm1310, 65537, 0
        %1312 = vrot.lane.b32.xlu0 %v1311, 32
        %v1313 = vpop.permute.xlu0 %1312
        %v1314 = vrot.slane %v1313, 4
        %vm1315 = vcmask 261120
        %v1316 = vsel %vm1315, %v1314, %v1313
        %v1317 = vunpack.c.l.b16 %v1316
        %v1318 = vunpack.c.h.b16 %v1316
        %v1319 = vunpack.c.l.b16 0
        %v1320 = vunpack.c.h.b16 0
        %vm1321 = vcmp.ne.s32.totalorder %v1317, %v1319
        %vm1322 = vcmp.ne.s32.totalorder %v1318, %v1320
        %vm1323 = vmpackc.low %vm1322, %vm1321
        %v1324 = vsel %vm1323, %v587, 0
        %v1325 = vsel %vm1323, %v588, 0
        %v1326 = vsel %vm1323, %v589, 0
        %v1327 = vsel %vm1323, %v590, 0
        %s1328 = scalar_lea.vmem %s3, 192
        %v1329 = vld [vmem:[%s1328] sm:$0xf]
        %v1330 = vld [vmem:[%s1328 + $0x4] sm:$0xf]
        %v1331 = vld [vmem:[%s1328 + $0x8] sm:$0xf]
        %v1332 = vld [vmem:[%s1328 + $0xc] sm:$0xf]
        %v1333 = vld [vmem:[%s1328 + $0x10] sm:$0xf]
        %v1334 = vld [vmem:[%s1328 + $0x14] sm:$0xf]
        %v1335 = vld [vmem:[%s1328 + $0x18] sm:$0xf]
        %v1336 = vld [vmem:[%s1328 + $0x1c] sm:$0xf]
        %v1345 = vunpack.c.l.b16 %v1329
        %v1346 = vunpack.c.l.b16 %v1330
        %v1347 = vunpack.c.l.b16 %v1331
        %v1348 = vunpack.c.l.b16 %v1332
        %v1349 = vunpack.c.l.b16 %v1333
        %v1350 = vunpack.c.l.b16 %v1334
        %v1351 = vunpack.c.l.b16 %v1335
        %v1352 = vunpack.c.l.b16 %v1336
        %v1353 = vpack.c.b16 %v1346, %v1345
        %v1354 = vpack.c.b16 %v1348, %v1347
        %v1355 = vpack.c.b16 %v1350, %v1349
        %v1356 = vpack.c.b16 %v1352, %v1351
        %v1361 = vunpack.c.l.b16 %v1324
        %v1362 = vunpack.c.h.b16 %v1324
        %v1363 = vunpack.c.l.b16 %v1325
        %v1364 = vunpack.c.h.b16 %v1325
        %v1365 = vunpack.c.l.b16 %v1326
        %v1366 = vunpack.c.h.b16 %v1326
        %v1367 = vunpack.c.l.b16 %v1327
        %v1368 = vunpack.c.h.b16 %v1327
        %v1369 = vpack.c.b16 %v1363, %v1361
        %v1370 = vpack.c.b16 %v1364, %v1362
        %v1371 = vpack.c.b16 %v1367, %v1365
        %v1372 = vpack.c.b16 %v1368, %v1366
        %1373 = vrot.lane.b32.xlu0 %v1369, 96
        %v1374 = vpop.permute.xlu0 %1373
        %1375 = vrot.lane.b32.xlu0 %v1370, 96
        %v1376 = vpop.permute.xlu0 %1375
        %1377 = vrot.lane.b32.xlu0 %v1371, 96
        %v1378 = vpop.permute.xlu0 %1377
        %1379 = vrot.lane.b32.xlu0 %v1372, 96
        %v1380 = vpop.permute.xlu0 %1379
        %vm1381 = vcmask 785408
        %v1382 = vsel %vm1381, %v1374, %v1376
        %v1383 = vsel %vm1381, %v1378, %v1380
        %v1387 = vsel %vm698, %v1353, 0
        %v1390 = vsel %vm698, %v1354, 0
        %v1393 = vsel %vm698, %v1355, 0
        %v1396 = vsel %vm698, %v1356, 0
        %1398 = vmatpush.bf16.msra.mxu0 0
        %1399 = vmatpush.bf16.msra.mxu0 0
        %1400 = vmatpush.bf16.msra.mxu0 0
        %1401 = vmatpush.bf16.msra.mxu0 0
        %1402 = vmatpush.bf16.msra.mxu0 0
        %1403 = vmatpush.bf16.msra.mxu0 0
        %1404 = vmatpush.bf16.msra.mxu0 %v1383
        %1405 = vmatpush.bf16.msra.mxu0 %v1382
        %1406 = vmatmul.bf16.gmra.mxu0 %v1387
        %v1407 = vpop.f32.mrf.mxu0
        %v1408 = vadd.f32 0.0, %v1407
        %v1409 = vpop.f32.mrf.mxu0
        %v1410 = vadd.f32 0.0, %v1409
        %1411 = vmatmul.bf16.gmra.mxu0 %v1390
        %v1412 = vpop.f32.mrf.mxu0
        %v1413 = vadd.f32 0.0, %v1412
        %v1414 = vpop.f32.mrf.mxu0
        %v1415 = vadd.f32 0.0, %v1414
        %1416 = vmatmul.bf16.gmra.mxu0 %v1393
        %v1417 = vpop.f32.mrf.mxu0
        %v1418 = vadd.f32 0.0, %v1417
        %v1419 = vpop.f32.mrf.mxu0
        %v1420 = vadd.f32 0.0, %v1419
        %1421 = vmatmul.bf16.gmra.mxu0 %v1396
        %v1422 = vpop.f32.mrf.mxu0
        %v1423 = vadd.f32 0.0, %v1422
        %v1424 = vpop.f32.mrf.mxu0
        %v1425 = vadd.f32 0.0, %v1424
        %1426 = vdwg.mxu0
        %v1427 = vadd.f32 %v1298, %v1408
        %v1428 = vadd.f32 %v1299, %v1410
        %v1429 = vadd.f32 %v1300, %v1413
        %v1430 = vadd.f32 %v1301, %v1415
        %v1431 = vadd.f32 %v1302, %v1418
        %v1432 = vadd.f32 %v1303, %v1420
        %v1433 = vadd.f32 %v1304, %v1423
        %v1434 = vadd.f32 %v1305, %v1425
        %v1435 = vsel %vm596, 1, 0
        %v1436 = vperm.slane %v1435, 0
        %vm1437 = vcmp.eq.s32.totalorder %v1436, 1
        %vm1438 = vmpackc.low %vm1437, %vm1437
        %v1439 = vsel %vm1438, 65537, 0
        %1440 = vrot.lane.b32.xlu0 %v1439, 33
        %v1441 = vpop.permute.xlu0 %1440
        %v1442 = vrot.slane %v1441, 4
        %vm1443 = vcmask 269312
        %v1444 = vsel %vm1443, %v1442, %v1441
        %v1445 = vunpack.c.l.b16 %v1444
        %v1446 = vunpack.c.h.b16 %v1444
        %v1447 = vunpack.c.l.b16 0
        %v1448 = vunpack.c.h.b16 0
        %vm1449 = vcmp.ne.s32.totalorder %v1445, %v1447
        %vm1450 = vcmp.ne.s32.totalorder %v1446, %v1448
        %vm1451 = vmpackc.low %vm1450, %vm1449
        %v1452 = vsel %vm1451, %v587, 0
        %v1453 = vsel %vm1451, %v588, 0
        %v1454 = vsel %vm1451, %v589, 0
        %v1455 = vsel %vm1451, %v590, 0
        %s1456 = scalar_lea.vmem %s3, 224
        %v1457 = vld [vmem:[%s1456] sm:$0xf]
        %v1458 = vld [vmem:[%s1456 + $0x4] sm:$0xf]
        %v1459 = vld [vmem:[%s1456 + $0x8] sm:$0xf]
        %v1460 = vld [vmem:[%s1456 + $0xc] sm:$0xf]
        %v1461 = vld [vmem:[%s1456 + $0x10] sm:$0xf]
        %v1462 = vld [vmem:[%s1456 + $0x14] sm:$0xf]
        %v1463 = vld [vmem:[%s1456 + $0x18] sm:$0xf]
        %v1464 = vld [vmem:[%s1456 + $0x1c] sm:$0xf]
        %v1473 = vunpack.c.l.b16 %v1457
        %v1474 = vunpack.c.l.b16 %v1458
        %v1475 = vunpack.c.l.b16 %v1459
        %v1476 = vunpack.c.l.b16 %v1460
        %v1477 = vunpack.c.l.b16 %v1461
        %v1478 = vunpack.c.l.b16 %v1462
        %v1479 = vunpack.c.l.b16 %v1463
        %v1480 = vunpack.c.l.b16 %v1464
        %v1481 = vpack.c.b16 %v1474, %v1473
        %v1482 = vpack.c.b16 %v1476, %v1475
        %v1483 = vpack.c.b16 %v1478, %v1477
        %v1484 = vpack.c.b16 %v1480, %v1479
        %v1489 = vunpack.c.l.b16 %v1452
        %v1490 = vunpack.c.h.b16 %v1452
        %v1491 = vunpack.c.l.b16 %v1453
        %v1492 = vunpack.c.h.b16 %v1453
        %v1493 = vunpack.c.l.b16 %v1454
        %v1494 = vunpack.c.h.b16 %v1454
        %v1495 = vunpack.c.l.b16 %v1455
        %v1496 = vunpack.c.h.b16 %v1455
        %v1497 = vpack.c.b16 %v1491, %v1489
        %v1498 = vpack.c.b16 %v1492, %v1490
        %v1499 = vpack.c.b16 %v1495, %v1493
        %v1500 = vpack.c.b16 %v1496, %v1494
        %1501 = vrot.lane.b32.xlu0 %v1497, 95
        %v1502 = vpop.permute.xlu0 %1501
        %1503 = vrot.lane.b32.xlu0 %v1498, 95
        %v1504 = vpop.permute.xlu0 %1503
        %1505 = vrot.lane.b32.xlu0 %v1499, 95
        %v1506 = vpop.permute.xlu0 %1505
        %1507 = vrot.lane.b32.xlu0 %v1500, 95
        %v1508 = vpop.permute.xlu0 %1507
        %vm1509 = vcmask 777216
        %v1510 = vsel %vm1509, %v1502, %v1504
        %v1511 = vsel %vm1509, %v1506, %v1508
        %v1515 = vsel %vm698, %v1481, 0
        %v1518 = vsel %vm698, %v1482, 0
        %v1521 = vsel %vm698, %v1483, 0
        %v1524 = vsel %vm698, %v1484, 0
        %1526 = vmatpush.bf16.msra.mxu0 0
        %1527 = vmatpush.bf16.msra.mxu0 0
        %1528 = vmatpush.bf16.msra.mxu0 0
        %1529 = vmatpush.bf16.msra.mxu0 0
        %1530 = vmatpush.bf16.msra.mxu0 0
        %1531 = vmatpush.bf16.msra.mxu0 0
        %1532 = vmatpush.bf16.msra.mxu0 %v1511
        %1533 = vmatpush.bf16.msra.mxu0 %v1510
        %1534 = vmatmul.bf16.gmra.mxu0 %v1515
        %v1535 = vpop.f32.mrf.mxu0
        %v1536 = vadd.f32 0.0, %v1535
        %v1537 = vpop.f32.mrf.mxu0
        %v1538 = vadd.f32 0.0, %v1537
        %1539 = vmatmul.bf16.gmra.mxu0 %v1518
        %v1540 = vpop.f32.mrf.mxu0
        %v1541 = vadd.f32 0.0, %v1540
        %v1542 = vpop.f32.mrf.mxu0
        %v1543 = vadd.f32 0.0, %v1542
        %1544 = vmatmul.bf16.gmra.mxu0 %v1521
        %v1545 = vpop.f32.mrf.mxu0
        %v1546 = vadd.f32 0.0, %v1545
        %v1547 = vpop.f32.mrf.mxu0
        %v1548 = vadd.f32 0.0, %v1547
        %1549 = vmatmul.bf16.gmra.mxu0 %v1524
        %v1550 = vpop.f32.mrf.mxu0
        %v1551 = vadd.f32 0.0, %v1550
        %v1552 = vpop.f32.mrf.mxu0
        %v1553 = vadd.f32 0.0, %v1552
        %1554 = vdwg.mxu0
        %v1555 = vadd.f32 %v1427, %v1536
        %v1556 = vadd.f32 %v1428, %v1538
        %v1557 = vadd.f32 %v1429, %v1541
        %v1558 = vadd.f32 %v1430, %v1543
        %v1559 = vadd.f32 %v1431, %v1546
        %v1560 = vadd.f32 %v1432, %v1548
        %v1561 = vadd.f32 %v1433, %v1551
        %v1562 = vadd.f32 %v1434, %v1553
        %vm1563 = vmand %vm596, %vm815
        %v1564 = vsel %vm1563, 1, 0
        %v1565 = vperm.slane %v1564, 0
        %vm1566 = vcmp.eq.s32.totalorder %v1565, 1
        %vm1567 = vmpackc.low %vm1566, %vm1566
        %v1568 = vsel %vm1567, 65537, 0
        %1569 = vrot.lane.b32.xlu0 %v1568, 34
        %v1570 = vpop.permute.xlu0 %1569
        %v1571 = vrot.slane %v1570, 4
        %vm1572 = vcmask 277504
        %v1573 = vsel %vm1572, %v1571, %v1570
        %v1574 = vunpack.c.l.b16 %v1573
        %v1575 = vunpack.c.h.b16 %v1573
        %v1576 = vunpack.c.l.b16 0
        %v1577 = vunpack.c.h.b16 0
        %vm1578 = vcmp.ne.s32.totalorder %v1574, %v1576
        %vm1579 = vcmp.ne.s32.totalorder %v1575, %v1577
        %vm1580 = vmpackc.low %vm1579, %vm1578
        %v1581 = vsel %vm1580, %v587, 0
        %v1582 = vsel %vm1580, %v588, 0
        %v1583 = vsel %vm1580, %v589, 0
        %v1584 = vsel %vm1580, %v590, 0
        %s1585 = scalar_lea.vmem %s3, 256
        %v1586 = vld [vmem:[%s1585] sm:$0xf]
        %v1587 = vld [vmem:[%s1585 + $0x4] sm:$0xf]
        %v1588 = vld [vmem:[%s1585 + $0x8] sm:$0xf]
        %v1589 = vld [vmem:[%s1585 + $0xc] sm:$0xf]
        %v1590 = vld [vmem:[%s1585 + $0x10] sm:$0xf]
        %v1591 = vld [vmem:[%s1585 + $0x14] sm:$0xf]
        %v1592 = vld [vmem:[%s1585 + $0x18] sm:$0xf]
        %v1593 = vld [vmem:[%s1585 + $0x1c] sm:$0xf]
        %v1602 = vunpack.c.l.b16 %v1586
        %v1603 = vunpack.c.l.b16 %v1587
        %v1604 = vunpack.c.l.b16 %v1588
        %v1605 = vunpack.c.l.b16 %v1589
        %v1606 = vunpack.c.l.b16 %v1590
        %v1607 = vunpack.c.l.b16 %v1591
        %v1608 = vunpack.c.l.b16 %v1592
        %v1609 = vunpack.c.l.b16 %v1593
        %v1610 = vpack.c.b16 %v1603, %v1602
        %v1611 = vpack.c.b16 %v1605, %v1604
        %v1612 = vpack.c.b16 %v1607, %v1606
        %v1613 = vpack.c.b16 %v1609, %v1608
        %v1618 = vunpack.c.l.b16 %v1581
        %v1619 = vunpack.c.h.b16 %v1581
        %v1620 = vunpack.c.l.b16 %v1582
        %v1621 = vunpack.c.h.b16 %v1582
        %v1622 = vunpack.c.l.b16 %v1583
        %v1623 = vunpack.c.h.b16 %v1583
        %v1624 = vunpack.c.l.b16 %v1584
        %v1625 = vunpack.c.h.b16 %v1584
        %v1626 = vpack.c.b16 %v1620, %v1618
        %v1627 = vpack.c.b16 %v1621, %v1619
        %v1628 = vpack.c.b16 %v1624, %v1622
        %v1629 = vpack.c.b16 %v1625, %v1623
        %1630 = vrot.lane.b32.xlu0 %v1626, 94
        %v1631 = vpop.permute.xlu0 %1630
        %1632 = vrot.lane.b32.xlu0 %v1627, 94
        %v1633 = vpop.permute.xlu0 %1632
        %1634 = vrot.lane.b32.xlu0 %v1628, 94
        %v1635 = vpop.permute.xlu0 %1634
        %1636 = vrot.lane.b32.xlu0 %v1629, 94
        %v1637 = vpop.permute.xlu0 %1636
        %vm1638 = vcmask 769024
        %v1639 = vsel %vm1638, %v1631, %v1633
        %v1640 = vsel %vm1638, %v1635, %v1637
        %v1644 = vsel %vm698, %v1610, 0
        %v1647 = vsel %vm698, %v1611, 0
        %v1650 = vsel %vm698, %v1612, 0
        %v1653 = vsel %vm698, %v1613, 0
        %1655 = vmatpush.bf16.msra.mxu0 0
        %1656 = vmatpush.bf16.msra.mxu0 0
        %1657 = vmatpush.bf16.msra.mxu0 0
        %1658 = vmatpush.bf16.msra.mxu0 0
        %1659 = vmatpush.bf16.msra.mxu0 0
        %1660 = vmatpush.bf16.msra.mxu0 0
        %1661 = vmatpush.bf16.msra.mxu0 %v1640
        %1662 = vmatpush.bf16.msra.mxu0 %v1639
        %1663 = vmatmul.bf16.gmra.mxu0 %v1644
        %v1664 = vpop.f32.mrf.mxu0
        %v1665 = vadd.f32 0.0, %v1664
        %v1666 = vpop.f32.mrf.mxu0
        %v1667 = vadd.f32 0.0, %v1666
        %1668 = vmatmul.bf16.gmra.mxu0 %v1647
        %v1669 = vpop.f32.mrf.mxu0
        %v1670 = vadd.f32 0.0, %v1669
        %v1671 = vpop.f32.mrf.mxu0
        %v1672 = vadd.f32 0.0, %v1671
        %1673 = vmatmul.bf16.gmra.mxu0 %v1650
        %v1674 = vpop.f32.mrf.mxu0
        %v1675 = vadd.f32 0.0, %v1674
        %v1676 = vpop.f32.mrf.mxu0
        %v1677 = vadd.f32 0.0, %v1676
        %1678 = vmatmul.bf16.gmra.mxu0 %v1653
        %v1679 = vpop.f32.mrf.mxu0
        %v1680 = vadd.f32 0.0, %v1679
        %v1681 = vpop.f32.mrf.mxu0
        %v1682 = vadd.f32 0.0, %v1681
        %1683 = vdwg.mxu0
        %v1684 = vadd.f32 %v1555, %v1665
        %v1685 = vadd.f32 %v1556, %v1667
        %v1686 = vadd.f32 %v1557, %v1670
        %v1687 = vadd.f32 %v1558, %v1672
        %v1688 = vadd.f32 %v1559, %v1675
        %v1689 = vadd.f32 %v1560, %v1677
        %v1690 = vadd.f32 %v1561, %v1680
        %v1691 = vadd.f32 %v1562, %v1682
        %v1692 = vld [vmem:[%s5] sm:$0xff]
        %v1693 = vld [vmem:[%s5 + $0x8] sm:$0xff]
        %v1694 = vld [vmem:[%s5 + $0x10] sm:$0xff]
        %v1695 = vld [vmem:[%s5 + $0x18] sm:$0xff]
        %v1696 = vld [vmem:[%s5 + $0x20] sm:$0xff]
        %v1697 = vld [vmem:[%s5 + $0x28] sm:$0xff]
        %v1698 = vld [vmem:[%s5 + $0x30] sm:$0xff]
        %v1699 = vld [vmem:[%s5 + $0x38] sm:$0xff]
        %1701 = vset.pattern.permute.xlu0 0
        %1702 = vperm.xlu0 %1701, %v1692
        %v1703 = vpop.permute.xlu0 %1702
        %1706 = vset.pattern.permute.xlu0 0
        %1707 = vperm.xlu0 %1706, %v1693
        %v1708 = vpop.permute.xlu0 %1707
        %1711 = vset.pattern.permute.xlu0 0
        %1712 = vperm.xlu0 %1711, %v1694
        %v1713 = vpop.permute.xlu0 %1712
        %1716 = vset.pattern.permute.xlu0 0
        %1717 = vperm.xlu0 %1716, %v1695
        %v1718 = vpop.permute.xlu0 %1717
        %1721 = vset.pattern.permute.xlu0 0
        %1722 = vperm.xlu0 %1721, %v1696
        %v1723 = vpop.permute.xlu0 %1722
        %1726 = vset.pattern.permute.xlu0 0
        %1727 = vperm.xlu0 %1726, %v1697
        %v1728 = vpop.permute.xlu0 %1727
        %1731 = vset.pattern.permute.xlu0 0
        %1732 = vperm.xlu0 %1731, %v1698
        %v1733 = vpop.permute.xlu0 %1732
        %1736 = vset.pattern.permute.xlu0 0
        %1737 = vperm.xlu0 %1736, %v1699
        %v1738 = vpop.permute.xlu0 %1737
        %v1740 = vadd.f32 %v1684, %v1703
        %v1741 = vadd.f32 %v1685, %v1708
        %v1742 = vadd.f32 %v1686, %v1713
        %v1743 = vadd.f32 %v1687, %v1718
        %v1744 = vadd.f32 %v1688, %v1723
        %v1745 = vadd.f32 %v1689, %v1728
        %v1746 = vadd.f32 %v1690, %v1733
        %v1747 = vadd.f32 %v1691, %v1738
        %v1748 = vmul.f32 %v1740, 0.1
        %v1749 = vmul.f32 %v1741, 0.1
        %v1750 = vmul.f32 %v1742, 0.1
        %v1751 = vmul.f32 %v1743, 0.1
        %v1752 = vmul.f32 %v1744, 0.1
        %v1753 = vmul.f32 %v1745, 0.1
        %v1754 = vmul.f32 %v1746, 0.1
        %v1755 = vmul.f32 %v1747, 0.1
        %v1756 = vmax.f32 %v1740, %v1748
        %v1757 = vmax.f32 %v1741, %v1749
        %v1758 = vmax.f32 %v1742, %v1750
        %v1759 = vmax.f32 %v1743, %v1751
        %v1760 = vmax.f32 %v1744, %v1752
        %v1761 = vmax.f32 %v1745, %v1753
        %v1762 = vmax.f32 %v1746, %v1754
        %v1763 = vmax.f32 %v1747, %v1755
        %v1764 = vunpack.c.l.bf16 %v399
        %v1765 = vunpack.c.l.bf16 %v400
        %v1766 = vunpack.c.l.bf16 %v401
        %v1767 = vunpack.c.l.bf16 %v402
        %v1768 = vunpack.c.l.bf16 %v403
        %v1769 = vunpack.c.l.bf16 %v404
        %v1770 = vunpack.c.l.bf16 %v405
        %v1771 = vunpack.c.l.bf16 %v406
        %v1772 = vadd.f32 %v1756, %v1764
        %v1773 = vadd.f32 %v1757, %v1765
        %v1774 = vadd.f32 %v1758, %v1766
        %v1775 = vadd.f32 %v1759, %v1767
        %v1776 = vadd.f32 %v1760, %v1768
        %v1777 = vadd.f32 %v1761, %v1769
        %v1778 = vadd.f32 %v1762, %v1770
        %v1779 = vadd.f32 %v1763, %v1771
        %1780 = vst [vmem:[%s386] sm:$0xff] %v1772
        %1781 = vst [vmem:[%s386 + $0x8] sm:$0xff] %v1773
        %1782 = vst [vmem:[%s386 + $0x10] sm:$0xff] %v1774
        %1783 = vst [vmem:[%s386 + $0x18] sm:$0xff] %v1775
        %1784 = vst [vmem:[%s386 + $0x20] sm:$0xff] %v1776
        %1785 = vst [vmem:[%s386 + $0x28] sm:$0xff] %v1777
        %1786 = vst [vmem:[%s386 + $0x30] sm:$0xff] %v1778
        %1787 = vst [vmem:[%s386 + $0x38] sm:$0xff] %v1779
        %s1788 = sand.u32 %s201, 1
        %s1789 = sand.u32 %s201, 1
        %s1790 = smul.addr %s1789, 64
        %s1791 = scalar_lea.vmem [#allocation3], %s1790
        // Predicated region
        $region90: #{darknet_block.1} parent=84 // pred_check
          %p1792 = pneg %p211
        $region91: #{darknet_block.1} parent=84 // pred_check_branch
          %1794 = sbr.rel (%p1792) target = $region93
        $region92: #{darknet_block.1} parent=84 // pred_region
          %s1795 = smul.addr %s22, 16
          %s1796 = sadd.s32 %s23, %s1795
          %s1797 = smul.addr %s1796, 8
          %s1798 = scalar_lea.vmem %s7, %s1797
          // Predicated region
          $region94: #{darknet_block.1} parent=92 // pred_check
            _
          $region95: #{darknet_block.1} parent=92 // pred_check_branch
            %1800 = sbr.rel (0) target = $region97
          $region96: #{darknet_block.1} parent=92 // pred_region
            // Predicated region
            $region98: #{darknet_block.1} parent=96 // pred_check
              _
            $region99: #{darknet_block.1} parent=96 // pred_check_branch
              %1802 = sbr.rel (0) target = $region101
            $region100: #{darknet_block.1} parent=96 // pred_region
              // Predicated region
              $region113: #{darknet_block.1} parent=100 // pred_check
                _
              $region114: #{darknet_block.1} parent=100 // pred_check_branch
                %1832 = sbr.rel (0) target = $region116
              $region115: #{darknet_block.1} parent=100 // pred_region
                loop: start=0, step=1, limit=1
                $region117: #{darknet_block.1} parent=115 // loop_pre_header
                  _
                $region118: #{darknet_block.1} parent=115 // loop_header
                  %s1834 = sphi 0, %s1838
                  %p1835 = scmp.ge.s32.totalorder %s1834, 1
                  %s1839 = sphi %s1791, %s1791
                  %s1840 = sphi %s1798, %s1798
                $region119: #{darknet_block.1} parent=115 // loop_header_branch
                  %1837 = sbr.rel (%p1835) target = $region123
                $region120: #{darknet_block.1} parent=115 // loop_body
                  %v1841 = vld [vmem:[%s1839] sm:$0xff]
                  %1842 = vst [vmem:[%s1840] sm:$0xff] %v1841
                  %v1843 = vld [vmem:[%s1839 + $0x8] sm:$0xff]
                  %1844 = vst [vmem:[%s1840 + $0x10] sm:$0xff] %v1843
                  %v1845 = vld [vmem:[%s1839 + $0x10] sm:$0xff]
                  %1846 = vst [vmem:[%s1840 + $0x20] sm:$0xff] %v1845
                  %v1847 = vld [vmem:[%s1839 + $0x18] sm:$0xff]
                  %1848 = vst [vmem:[%s1840 + $0x30] sm:$0xff] %v1847
                  %v1849 = vld [vmem:[%s1839 + $0x20] sm:$0xff]
                  %1850 = vst [vmem:[%s1840 + $0x40] sm:$0xff] %v1849
                  %v1851 = vld [vmem:[%s1839 + $0x28] sm:$0xff]
                  %1852 = vst [vmem:[%s1840 + $0x50] sm:$0xff] %v1851
                  %v1853 = vld [vmem:[%s1839 + $0x30] sm:$0xff]
                  %1854 = vst [vmem:[%s1840 + $0x60] sm:$0xff] %v1853
                  %v1855 = vld [vmem:[%s1839 + $0x38] sm:$0xff]
                  %1856 = vst [vmem:[%s1840 + $0x70] sm:$0xff] %v1855
                $region121: #{darknet_block.1} parent=115 // loop_footer
                  %s1838 = sadd.s32 1, %s1834
                $region122: #{darknet_block.1} parent=115 // loop_footer_branch
                  %1833 = sbr.rel target = $region118
                $region123: #{darknet_block.1} parent=115 // loop_exit
                  _
              $region116: #{darknet_block.1} parent=100 // pred_fallthru
                _
              // Predicated region
              $region124: #{darknet_block.1} parent=100 // pred_check
                _
              $region125: #{darknet_block.1} parent=100 // pred_check_branch
                %1858 = sbr.rel target = $region127
              $region126: #{darknet_block.1} parent=100 // pred_region
                _
              $region127: #{darknet_block.1} parent=100 // pred_fallthru
                _
            $region101: #{darknet_block.1} parent=96 // pred_fallthru
              _
            // Predicated region
            $region102: #{darknet_block.1} parent=96 // pred_check
              _
            $region103: #{darknet_block.1} parent=96 // pred_check_branch
              %1804 = sbr.rel target = $region105
            $region104: #{darknet_block.1} parent=96 // pred_region
              %s1806 = ssub.s32 256, 1
              loop: start=0, step=1, limit=1
              $region106: #{darknet_block.1} parent=104 // loop_pre_header
                _
              $region107: #{darknet_block.1} parent=104 // loop_header
                %s1808 = sphi 0, %s1812
                %p1809 = scmp.ge.s32.totalorder %s1808, 1
                %s1813 = sphi %s1791, %s1791
                %s1814 = sphi %s1798, %s1798
              $region108: #{darknet_block.1} parent=104 // loop_header_branch
                %1811 = sbr.rel (%p1809) target = $region112
              $region109: #{darknet_block.1} parent=104 // loop_body
                %v1815 = vld [vmem:[%s1813] sm:%s1806]
                %1816 = vst [vmem:[%s1814] sm:%s1806] %v1815
                %v1817 = vld [vmem:[%s1813 + $0x8] sm:%s1806]
                %1818 = vst [vmem:[%s1814 + $0x10] sm:%s1806] %v1817
                %v1819 = vld [vmem:[%s1813 + $0x10] sm:%s1806]
                %1820 = vst [vmem:[%s1814 + $0x20] sm:%s1806] %v1819
                %v1821 = vld [vmem:[%s1813 + $0x18] sm:%s1806]
                %1822 = vst [vmem:[%s1814 + $0x30] sm:%s1806] %v1821
                %v1823 = vld [vmem:[%s1813 + $0x20] sm:%s1806]
                %1824 = vst [vmem:[%s1814 + $0x40] sm:%s1806] %v1823
                %v1825 = vld [vmem:[%s1813 + $0x28] sm:%s1806]
                %1826 = vst [vmem:[%s1814 + $0x50] sm:%s1806] %v1825
                %v1827 = vld [vmem:[%s1813 + $0x30] sm:%s1806]
                %1828 = vst [vmem:[%s1814 + $0x60] sm:%s1806] %v1827
                %v1829 = vld [vmem:[%s1813 + $0x38] sm:%s1806]
                %1830 = vst [vmem:[%s1814 + $0x70] sm:%s1806] %v1829
              $region110: #{darknet_block.1} parent=104 // loop_footer
                %s1812 = sadd.s32 1, %s1808
              $region111: #{darknet_block.1} parent=104 // loop_footer_branch
                %1807 = sbr.rel target = $region107
              $region112: #{darknet_block.1} parent=104 // loop_exit
                _
            $region105: #{darknet_block.1} parent=96 // pred_fallthru
              _
          $region97: #{darknet_block.1} parent=92 // pred_fallthru
            _
          %1859 = vnop
        $region93: #{darknet_block.1} parent=84 // pred_fallthru
          _
      $region85: #{darknet_block.1} parent=5 // pred_fallthru
        _
      %p1860 = scmp.le.s32.totalorder 2, %s13
      // Predicated region
      $region128: #{darknet_block.1} parent=5 // pred_check
        %p1861 = pneg %p1860
      $region129: #{darknet_block.1} parent=5 // pred_check_branch
        %1863 = sbr.rel (%p1861) target = $region131
      $region130: #{darknet_block.1} parent=5 // pred_region
        %s1864 = ssub.s32 %s13, 2
        // Predicated region
        $region132: #{darknet_block.1} parent=130 // pred_check
          %p1865 = pneg %p217
        $region133: #{darknet_block.1} parent=130 // pred_check_branch
          %1867 = sbr.rel (%p1865) target = $region135
        $region134: #{darknet_block.1} parent=130 // pred_region
          %s1868 = sand.u32 %s202, 1
          %s1869 = sand.u32 %s202, 1
          %s1870 = smul.addr %s1869, 64
          %s1871 = scalar_lea.vmem [#allocation3], %s1870
        $region135: #{darknet_block.1} parent=130 // pred_fallthru
          _
      $region131: #{darknet_block.1} parent=5 // pred_fallthru
        _
    $region6: #{darknet_block.1} parent=1 // loop_footer
      %s17 = sadd.s32 1, %s13
    $region7: #{darknet_block.1} parent=1 // loop_footer_branch
      %12 = sbr.rel target = $region3
    $region8: #{darknet_block.1} parent=1 // loop_exit
      _

</llo_original>
